<compile_context>
chip_gen: v6e
topology: v6e:2x2x1
jax: 0.10.0
libtpu: 0.0.40
codegen_flags: <defaults>
</compile_context>

<pallas_src>
import functools

import jax
import jax.numpy as jnp
from jax import lax
from jax.experimental import pallas as pl
from jax.experimental.pallas import tpu as pltpu


def _make_kta_kernel(n, tile, padded, gram_dtype):
    """Builds the tiled KTA kernel body (n, tile, padded, gram_dtype are static)."""

    def kernel(gamma_ref, xi_ref, xj_ref, sqc_ref, sqr_ref, ti_ref, tj_ref,
               num_ref, kk_ref):
        i = pl.program_id(0)
        j = pl.program_id(1)

        # Per-row-block accumulators live in the (revisited) output blocks.
        @pl.when(j == 0)
        def _():
            num_ref[...] = jnp.zeros_like(num_ref)
            kk_ref[...] = jnp.zeros_like(kk_ref)

        gamma = gamma_ref[0]

        # Gram tile on the MXU, contracting the feature (last) dim of both tiles:
        # no transpose of X is ever materialized.
        xi = xi_ref[...].astype(gram_dtype)
        xj = xj_ref[...].astype(gram_dtype)
        gram = lax.dot_general(
            xi, xj,
            dimension_numbers=(((1,), (1,)), ((), ())),
            preferred_element_type=jnp.float32)                      # (tile, tile)

        # ||xi - xj||^2 via norm expansion; row norms arrive pre-transposed from the
        # wrapper as a column (tile,1) and a lane-dense row (1,tile).
        d2 = jnp.maximum(sqc_ref[...] + sqr_ref[...] - 2.0 * gram, 0.0)
        k = jnp.exp(-gamma * d2)                                     # (tile, tile) f32

        ti = ti_ref[...]                                             # (tile, 1)
        tj = tj_ref[...]                                             # (tile, 1)

        # <K_tile, t_i t_j^T> = t_i . (K_tile @ t_j): rides the MXU, no outer(t,t).
        kt = jnp.dot(k, tj, preferred_element_type=jnp.float32)      # (tile, 1)
        num_ref[...] += jnp.sum(kt * ti)
        kk_ref[...] += jnp.sum(k * k)

        # Diagonal fix-up (reference K starts from eye(N)): only diagonal tiles pay,
        # and it is applied as scalar corrections instead of rewriting K.
        @pl.when(i == j)
        def _():
            row = lax.broadcasted_iota(jnp.int32, (tile, tile), 0)
            col = lax.broadcasted_iota(jnp.int32, (tile, tile), 1)
            on_diag = row == col
            # num: replace k_dd by 1.0  ->  add t_d^2 * (1 - k_dd)
            # (zero-padded targets kill padded rows automatically).
            one_minus_kdd = jnp.sum(jnp.where(on_diag, 1.0 - k, 0.0),
                                    axis=1, keepdims=True)           # (tile, 1)
            num_ref[...] += jnp.sum(one_minus_kdd * ti * ti)
            # kk: replace k_dd^2 by 1.0 on *valid* diagonal entries only.
            if padded:
                valid_diag = on_diag & ((i * tile + row) < n)
            else:
                valid_diag = on_diag
            kk_ref[...] += jnp.sum(jnp.where(valid_diag, 1.0 - k * k, 0.0))

        if padded:
            # Remove padded rows/cols from <K, K>; padded rows never reach <K, tt^T>
            # because the target is zero-padded.  Only boundary tiles pay for this.
            @pl.when((i == pl.num_programs(0) - 1) | (j == pl.num_programs(1) - 1))
            def _():
                grow = i * tile + lax.broadcasted_iota(jnp.int32, (tile, tile), 0)
                gcol = j * tile + lax.broadcasted_iota(jnp.int32, (tile, tile), 1)
                invalid = (grow >= n) | (gcol >= n)
                kk_ref[...] -= jnp.sum(jnp.where(invalid, k * k, 0.0))

    return kernel


@functools.partial(jax.jit, static_argnames=("tile", "gram_dtype"))
def kta_loss(x, target, gamma, *, tile=256, gram_dtype=jnp.float32):
    """Negative kernel-target alignment with an RBF kernel, computed in Pallas."""
    assert tile % 128 == 0, "tile must be a multiple of 128 (lane width of K tiles)"

    x = x.astype(jnp.float32)
    n, d = x.shape
    n_blocks = int(pl.cdiv(n, tile))
    n_pad = n_blocks * tile
    padded = n_pad != n

    t = target.astype(jnp.float32).reshape(n)
    if padded:
        x_p = jnp.zeros((n_pad, d), jnp.float32).at[:n].set(x)
        t_p = jnp.zeros((n_pad,), jnp.float32).at[:n].set(t)
    else:
        x_p, t_p = x, t

    sq = jnp.sum(x_p * x_p, axis=1)
    sq_col = sq.reshape(n_pad, 1)          # (N,1) column
    sq_row = sq.reshape(1, n_pad)          # lane-dense (1,N) row: no in-kernel transpose
    t_col = t_p.reshape(n_pad, 1)
    gamma_arr = jnp.asarray(gamma, dtype=jnp.float32).reshape(1)

    kernel = _make_kta_kernel(n, tile, padded, gram_dtype)

    num_parts, kk_parts = pl.pallas_call(
        kernel,
        out_shape=(
            jax.ShapeDtypeStruct((n_blocks, 8, 128), jnp.float32),   # partial <K, tt^T>
            jax.ShapeDtypeStruct((n_blocks, 8, 128), jnp.float32),   # partial <K, K>
        ),
        grid_spec=pltpu.PrefetchScalarGridSpec(
            num_scalar_prefetch=0,
            grid=(n_blocks, n_blocks),
            in_specs=[
                pl.BlockSpec(memory_space=pltpu.SMEM),               # gamma (params)
                pl.BlockSpec((tile, d), lambda i, j: (i, 0)),        # X rows  (i block)
                pl.BlockSpec((tile, d), lambda i, j: (j, 0)),        # X rows  (j block)
                pl.BlockSpec((tile, 1), lambda i, j: (i, 0)),        # ||x||^2 column
                pl.BlockSpec((1, tile), lambda i, j: (0, j)),        # ||x||^2 row
                pl.BlockSpec((tile, 1), lambda i, j: (i, 0)),        # target (i block)
                pl.BlockSpec((tile, 1), lambda i, j: (j, 0)),        # target (j block)
            ],
            out_specs=[
                pl.BlockSpec((1, 8, 128), lambda i, j: (i, 0, 0)),
                pl.BlockSpec((1, 8, 128), lambda i, j: (i, 0, 0)),
            ],
        ),
        compiler_params=pltpu.CompilerParams(
            dimension_semantics=("parallel", "arbitrary")),
    )(gamma_arr, x_p, x_p, sq_col, sq_row, t_col, t_col)

    # Tiny final reduction + normalization in plain JAX.
    num_total = jnp.sum(num_parts[:, 0, 0])
    kk_total = jnp.sum(kk_parts[:, 0, 0])
    return -(num_total / (jnp.float32(n) * jnp.sqrt(kk_total)))


def _kta_loss_ref(x, target, gamma):
    """Pure-JAX reference mirroring the PyTorch module semantics."""
    n = x.shape[0]
    d2 = jnp.sum((x[:, None, :] - x[None, :, :]) ** 2, axis=-1)
    k = jnp.exp(-gamma * d2)
    k = jnp.where(jnp.eye(n, dtype=bool), 1.0, k)
    k_target = jnp.outer(target, target)
    kta = jnp.sum(k * k_target) / (n * jnp.sqrt(jnp.sum(k * k)))
    return -kta


if __name__ == "__main__":
    key = jax.random.PRNGKey(0)
    kx, ktgt = jax.random.split(key)

    N, D = 200, 32                      # small shapes: N samples, D features
    X = jax.random.normal(kx, (N, D), dtype=jnp.float32)
    target = jnp.sign(jax.random.normal(ktgt, (N,), dtype=jnp.float32))
    target = jnp.where(target == 0, jnp.float32(1.0), target)   # binary +/-1 labels
    gamma = 0.5                         # deterministic "params" for the RBF kernel

    # Multi-tile path: 2x2 grid of 128-wide tiles, with diagonal + padding corrections.
    loss = kta_loss(X, target, gamma, tile=128)
    jax.block_until_ready(loss)
    ref = _kta_loss_ref(X, target, gamma)
    assert jnp.allclose(loss, ref, atol=1e-5, rtol=1e-5), (float(loss), float(ref))

    # Exact tile-multiple path (no padding corrections traced).
    N2 = 128
    loss2 = kta_loss(X[:N2], target[:N2], gamma, tile=128)
    jax.block_until_ready(loss2)
    ref2 = _kta_loss_ref(X[:N2], target[:N2], gamma)
    assert jnp.allclose(loss2, ref2, atol=1e-5, rtol=1e-5), (float(loss2), float(ref2))

    # bf16 Gram (recommended on v6e/v7x MXU); exp / norms / reductions stay f32.
    loss3 = kta_loss(X, target, gamma, tile=128, gram_dtype=jnp.bfloat16)
    jax.block_until_ready(loss3)
    assert jnp.allclose(loss3, ref, atol=5e-3, rtol=5e-3), (float(loss3), float(ref))

    print("KERNEL_OK")
</pallas_src>

<mosaic_0001>
module attributes {stable_mosaic.version = 11 : i64} {
  func.func @kernel(%arg0: i32, %arg1: i32, %arg2: memref<1xf32, #tpu.memory_space<smem>>, %arg3: memref<128x32xf32, #tpu.memory_space<vmem>>, %arg4: memref<128x32xf32, #tpu.memory_space<vmem>>, %arg5: memref<128x1xf32, #tpu.memory_space<vmem>>, %arg6: memref<1x128xf32, #tpu.memory_space<vmem>>, %arg7: memref<128x1xf32, #tpu.memory_space<vmem>>, %arg8: memref<128x1xf32, #tpu.memory_space<vmem>>, %arg9: memref<1x8x128xf32, #tpu.memory_space<vmem>>, %arg10: memref<1x8x128xf32, #tpu.memory_space<vmem>>) attributes {dimension_semantics = [#tpu.dimension_semantics<parallel>, #tpu.dimension_semantics<arbitrary>], iteration_bounds = array<i64: 2, 2>, scalar_prefetch = 0 : i64, scratch_operands = 0 : i64, tpu.core_type = #tpu.core_type<tc>, window_params = [{transform_indices = @transform_0, window_bounds = array<i64: 1>}, {transform_indices = @transform_1, window_bounds = array<i64: 128, 32>}, {transform_indices = @transform_2, window_bounds = array<i64: 128, 32>}, {transform_indices = @transform_3, window_bounds = array<i64: 128, 1>}, {transform_indices = @transform_4, window_bounds = array<i64: 1, 128>}, {transform_indices = @transform_5, window_bounds = array<i64: 128, 1>}, {transform_indices = @transform_6, window_bounds = array<i64: 128, 1>}, {transform_indices = @transform_7, window_bounds = array<i64: 1, 8, 128>}, {transform_indices = @transform_8, window_bounds = array<i64: 1, 8, 128>}]} {
    %c0_i32 = arith.constant 0 : i32
    %0 = arith.cmpi eq, %arg1, %c0_i32 : i32
    %1 = arith.extui %0 : i1 to i32
    %c0_i32_0 = arith.constant 0 : i32
    %2 = arith.cmpi ne, %1, %c0_i32_0 : i32
    scf.if %2 {
      %cst_34 = arith.constant 0.000000e+00 : f32
      %50 = vector.broadcast %cst_34 : f32 to vector<1x8x128xf32>
      %c0_35 = arith.constant 0 : index
      %c0_36 = arith.constant 0 : index
      %c0_37 = arith.constant 0 : index
      %51 = vector.load %arg9[%c0_35, %c0_36, %c0_37] : memref<1x8x128xf32, #tpu.memory_space<vmem>>, vector<1x8x128xf32>
      tpu.vector_store %arg9[%c0_35, %c0_36, %c0_37], %50 {strides = array<i32>} : memref<1x8x128xf32, #tpu.memory_space<vmem>>, vector<1x8x128xf32>,
      %cst_38 = arith.constant 0.000000e+00 : f32
      %52 = vector.broadcast %cst_38 : f32 to vector<1x8x128xf32>
      %c0_39 = arith.constant 0 : index
      %c0_40 = arith.constant 0 : index
      %c0_41 = arith.constant 0 : index
      %53 = vector.load %arg10[%c0_39, %c0_40, %c0_41] : memref<1x8x128xf32, #tpu.memory_space<vmem>>, vector<1x8x128xf32>
      tpu.vector_store %arg10[%c0_39, %c0_40, %c0_41], %52 {strides = array<i32>} : memref<1x8x128xf32, #tpu.memory_space<vmem>>, vector<1x8x128xf32>,
    } else {
    }
    %c0 = arith.constant 0 : index
    %3 = memref.load %arg2[%c0] : memref<1xf32, #tpu.memory_space<smem>>
    %c0_1 = arith.constant 0 : index
    %c0_2 = arith.constant 0 : index
    %4 = vector.load %arg3[%c0_1, %c0_2] : memref<128x32xf32, #tpu.memory_space<vmem>>, vector<128x32xf32>
    %c0_3 = arith.constant 0 : index
    %c0_4 = arith.constant 0 : index
    %5 = vector.load %arg4[%c0_3, %c0_4] : memref<128x32xf32, #tpu.memory_space<vmem>>, vector<128x32xf32>
    %cst = arith.constant dense<0.000000e+00> : vector<128x128xf32>
    %6 = tpu.matmul %4, %5, %cst {dimension_numbers = #tpu.dot_dimension_numbers<[1], [1], [0], [0], [0, 0, 1, 0], [], []>} : vector<128x32xf32>, vector<128x32xf32>, vector<128x128xf32> -> vector<128x128xf32>
    %c0_5 = arith.constant 0 : index
    %c0_6 = arith.constant 0 : index
    %7 = vector.load %arg5[%c0_5, %c0_6] : memref<128x1xf32, #tpu.memory_space<vmem>>, vector<128x1xf32>
    %c0_7 = arith.constant 0 : index
    %c0_8 = arith.constant 0 : index
    %8 = vector.load %arg6[%c0_7, %c0_8] : memref<1x128xf32, #tpu.memory_space<vmem>>, vector<1x128xf32>
    %9 = vector.broadcast %7 : vector<128x1xf32> to vector<128x128xf32>
    %10 = vector.broadcast %8 : vector<1x128xf32> to vector<128x128xf32>
    %11 = arith.addf %9, %10 : vector<128x128xf32>
    %cst_9 = arith.constant 2.000000e+00 : f32
    %12 = vector.broadcast %cst_9 : f32 to vector<128x128xf32>
    %13 = arith.mulf %12, %6 : vector<128x128xf32>
    %14 = arith.subf %11, %13 : vector<128x128xf32>
    %cst_10 = arith.constant 0.000000e+00 : f32
    %15 = vector.broadcast %cst_10 : f32 to vector<128x128xf32>
    %16 = arith.maximumf %14, %15 : vector<128x128xf32>
    %cst_11 = arith.constant 0.000000e+00 : f32
    %17 = arith.subf %cst_11, %3 : f32
    %18 = vector.broadcast %17 : f32 to vector<128x128xf32>
    %19 = arith.mulf %18, %16 : vector<128x128xf32>
    %20 = math.exp %19 : vector<128x128xf32>
    %c0_12 = arith.constant 0 : index
    %c0_13 = arith.constant 0 : index
    %21 = vector.load %arg7[%c0_12, %c0_13] : memref<128x1xf32, #tpu.memory_space<vmem>>, vector<128x1xf32>
    %c0_14 = arith.constant 0 : index
    %c0_15 = arith.constant 0 : index
    %22 = vector.load %arg8[%c0_14, %c0_15] : memref<128x1xf32, #tpu.memory_space<vmem>>, vector<128x1xf32>
    %cst_16 = arith.constant dense<0.000000e+00> : vector<128x1xf32>
    %23 = tpu.matmul %20, %22, %cst_16 {dimension_numbers = #tpu.dot_dimension_numbers<[1], [0], [0], [1], [0, 0, 1, 1], [], []>} : vector<128x128xf32>, vector<128x1xf32>, vector<128x1xf32> -> vector<128x1xf32>
    %c0_17 = arith.constant 0 : index
    %c0_18 = arith.constant 0 : index
    %c0_19 = arith.constant 0 : index
    %24 = vector.load %arg9[%c0_17, %c0_18, %c0_19] : memref<1x8x128xf32, #tpu.memory_space<vmem>>, vector<1x8x128xf32>
    %25 = arith.mulf %23, %21 : vector<128x1xf32>
    %26 = vector.shape_cast %25 : vector<128x1xf32> to vector<1x128x1xf32>
    %cst_20 = arith.constant dense<0.000000e+00> : vector<1xf32>
    %27 = vector.multi_reduction <add>, %26, %cst_20 [1, 2] : vector<1x128x1xf32> to vector<1xf32>
    %28 = vector.shape_cast %27 : vector<1xf32> to vector<1x1x1xf32>
    %29 = vector.extract %28[0, 0, 0] : f32 from vector<1x1x1xf32>
    %30 = vector.broadcast %29 : f32 to vector<1x8x128xf32>
    %31 = arith.addf %24, %30 : vector<1x8x128xf32>
    %c0_21 = arith.constant 0 : index
    %c0_22 = arith.constant 0 : index
    %c0_23 = arith.constant 0 : index
    %32 = vector.load %arg9[%c0_21, %c0_22, %c0_23] : memref<1x8x128xf32, #tpu.memory_space<vmem>>, vector<1x8x128xf32>
    tpu.vector_store %arg9[%c0_21, %c0_22, %c0_23], %31 {strides = array<i32>} : memref<1x8x128xf32, #tpu.memory_space<vmem>>, vector<1x8x128xf32>,
    %c0_24 = arith.constant 0 : index
    %c0_25 = arith.constant 0 : index
    %c0_26 = arith.constant 0 : index
    %33 = vector.load %arg10[%c0_24, %c0_25, %c0_26] : memref<1x8x128xf32, #tpu.memory_space<vmem>>, vector<1x8x128xf32>
    %34 = arith.mulf %20, %20 : vector<128x128xf32>
    %35 = vector.shape_cast %34 : vector<128x128xf32> to vector<1x128x128xf32>
    %cst_27 = arith.constant dense<0.000000e+00> : vector<1xf32>
    %36 = vector.multi_reduction <add>, %35, %cst_27 [1, 2] : vector<1x128x128xf32> to vector<1xf32>
    %37 = vector.shape_cast %36 : vector<1xf32> to vector<1x1x1xf32>
    %38 = vector.extract %37[0, 0, 0] : f32 from vector<1x1x1xf32>
    %39 = vector.broadcast %38 : f32 to vector<1x8x128xf32>
    %40 = arith.addf %33, %39 : vector<1x8x128xf32>
    %c0_28 = arith.constant 0 : index
    %c0_29 = arith.constant 0 : index
    %c0_30 = arith.constant 0 : index
    %41 = vector.load %arg10[%c0_28, %c0_29, %c0_30] : memref<1x8x128xf32, #tpu.memory_space<vmem>>, vector<1x8x128xf32>
    tpu.vector_store %arg10[%c0_28, %c0_29, %c0_30], %40 {strides = array<i32>} : memref<1x8x128xf32, #tpu.memory_space<vmem>>, vector<1x8x128xf32>,
    %42 = arith.cmpi eq, %arg0, %arg1 : i32
    %43 = arith.extui %42 : i1 to i32
    %c0_i32_31 = arith.constant 0 : i32
    %44 = arith.cmpi ne, %43, %c0_i32_31 : i32
    scf.if %44 {
      %50 = tpu.iota {dimensions = array<i32: 0>} : vector<128x128xi32>
      %51 = tpu.iota {dimensions = array<i32: 1>} : vector<128x128xi32>
      %52 = arith.cmpi eq, %50, %51 : vector<128x128xi32>
      %cst_34 = arith.constant 1.000000e+00 : f32
      %53 = vector.broadcast %cst_34 : f32 to vector<128x128xf32>
      %54 = arith.subf %53, %20 : vector<128x128xf32>
      %cst_35 = arith.constant 0.000000e+00 : f32
      %55 = vector.broadcast %cst_35 : f32 to vector<128x128xf32>
      %56 = arith.select %52, %54, %55 : vector<128x128xi1>, vector<128x128xf32>
      %cst_36 = arith.constant dense<0.000000e+00> : vector<128xf32>
      %57 = vector.multi_reduction <add>, %56, %cst_36 [1] : vector<128x128xf32> to vector<128xf32>
      %58 = vector.shape_cast %57 : vector<128xf32> to vector<128x1xf32>
      %c0_37 = arith.constant 0 : index
      %c0_38 = arith.constant 0 : index
      %c0_39 = arith.constant 0 : index
      %59 = vector.load %arg9[%c0_37, %c0_38, %c0_39] : memref<1x8x128xf32, #tpu.memory_space<vmem>>, vector<1x8x128xf32>
      %60 = arith.mulf %58, %21 : vector<128x1xf32>
      %61 = arith.mulf %60, %21 : vector<128x1xf32>
      %62 = vector.shape_cast %61 : vector<128x1xf32> to vector<1x128x1xf32>
      %cst_40 = arith.constant dense<0.000000e+00> : vector<1xf32>
      %63 = vector.multi_reduction <add>, %62, %cst_40 [1, 2] : vector<1x128x1xf32> to vector<1xf32>
      %64 = vector.shape_cast %63 : vector<1xf32> to vector<1x1x1xf32>
      %65 = vector.extract %64[0, 0, 0] : f32 from vector<1x1x1xf32>
      %66 = vector.broadcast %65 : f32 to vector<1x8x128xf32>
      %67 = arith.addf %59, %66 : vector<1x8x128xf32>
      %c0_41 = arith.constant 0 : index
      %c0_42 = arith.constant 0 : index
      %c0_43 = arith.constant 0 : index
      %68 = vector.load %arg9[%c0_41, %c0_42, %c0_43] : memref<1x8x128xf32, #tpu.memory_space<vmem>>, vector<1x8x128xf32>
      tpu.vector_store %arg9[%c0_41, %c0_42, %c0_43], %67 {strides = array<i32>} : memref<1x8x128xf32, #tpu.memory_space<vmem>>, vector<1x8x128xf32>,
      %c128_i32 = arith.constant 128 : i32
      %69 = arith.muli %arg0, %c128_i32 : i32
      %70 = vector.broadcast %69 : i32 to vector<128x128xi32>
      %71 = arith.addi %70, %50 : vector<128x128xi32>
      %c200_i32 = arith.constant 200 : i32
      %72 = vector.broadcast %c200_i32 : i32 to vector<128x128xi32>
      %73 = arith.cmpi slt, %71, %72 : vector<128x128xi32>
      %74 = arith.andi %52, %73 : vector<128x128xi1>
      %c0_44 = arith.constant 0 : index
      %c0_45 = arith.constant 0 : index
      %c0_46 = arith.constant 0 : index
      %75 = vector.load %arg10[%c0_44, %c0_45, %c0_46] : memref<1x8x128xf32, #tpu.memory_space<vmem>>, vector<1x8x128xf32>
      %76 = arith.mulf %20, %20 : vector<128x128xf32>
      %cst_47 = arith.constant 1.000000e+00 : f32
      %77 = vector.broadcast %cst_47 : f32 to vector<128x128xf32>
      %78 = arith.subf %77, %76 : vector<128x128xf32>
      %cst_48 = arith.constant 0.000000e+00 : f32
      %79 = vector.broadcast %cst_48 : f32 to vector<128x128xf32>
      %80 = arith.select %74, %78, %79 : vector<128x128xi1>, vector<128x128xf32>
      %81 = vector.shape_cast %80 : vector<128x128xf32> to vector<1x128x128xf32>
      %cst_49 = arith.constant dense<0.000000e+00> : vector<1xf32>
      %82 = vector.multi_reduction <add>, %81, %cst_49 [1, 2] : vector<1x128x128xf32> to vector<1xf32>
      %83 = vector.shape_cast %82 : vector<1xf32> to vector<1x1x1xf32>
      %84 = vector.extract %83[0, 0, 0] : f32 from vector<1x1x1xf32>
      %85 = vector.broadcast %84 : f32 to vector<1x8x128xf32>
      %86 = arith.addf %75, %85 : vector<1x8x128xf32>
      %c0_50 = arith.constant 0 : index
      %c0_51 = arith.constant 0 : index
      %c0_52 = arith.constant 0 : index
      %87 = vector.load %arg10[%c0_50, %c0_51, %c0_52] : memref<1x8x128xf32, #tpu.memory_space<vmem>>, vector<1x8x128xf32>
      tpu.vector_store %arg10[%c0_50, %c0_51, %c0_52], %86 {strides = array<i32>} : memref<1x8x128xf32, #tpu.memory_space<vmem>>, vector<1x8x128xf32>,
    } else {
    }
    %c1_i32 = arith.constant 1 : i32
    %45 = arith.cmpi eq, %arg0, %c1_i32 : i32
    %c1_i32_32 = arith.constant 1 : i32
    %46 = arith.cmpi eq, %arg1, %c1_i32_32 : i32
    %47 = arith.ori %45, %46 : i1
    %48 = arith.extui %47 : i1 to i32
    %c0_i32_33 = arith.constant 0 : i32
    %49 = arith.cmpi ne, %48, %c0_i32_33 : i32
    scf.if %49 {
      %c128_i32 = arith.constant 128 : i32
      %50 = arith.muli %arg0, %c128_i32 : i32
      %51 = tpu.iota {dimensions = array<i32: 0>} : vector<128x128xi32>
      %52 = vector.broadcast %50 : i32 to vector<128x128xi32>
      %53 = arith.addi %52, %51 : vector<128x128xi32>
      %c128_i32_34 = arith.constant 128 : i32
      %54 = arith.muli %arg1, %c128_i32_34 : i32
      %55 = tpu.iota {dimensions = array<i32: 1>} : vector<128x128xi32>
      %56 = vector.broadcast %54 : i32 to vector<128x128xi32>
      %57 = arith.addi %56, %55 : vector<128x128xi32>
      %c200_i32 = arith.constant 200 : i32
      %58 = vector.broadcast %c200_i32 : i32 to vector<128x128xi32>
      %59 = arith.cmpi sge, %53, %58 : vector<128x128xi32>
      %c200_i32_35 = arith.constant 200 : i32
      %60 = vector.broadcast %c200_i32_35 : i32 to vector<128x128xi32>
      %61 = arith.cmpi sge, %57, %60 : vector<128x128xi32>
      %62 = arith.ori %59, %61 : vector<128x128xi1>
      %c0_36 = arith.constant 0 : index
      %c0_37 = arith.constant 0 : index
      %c0_38 = arith.constant 0 : index
      %63 = vector.load %arg10[%c0_36, %c0_37, %c0_38] : memref<1x8x128xf32, #tpu.memory_space<vmem>>, vector<1x8x128xf32>
      %64 = arith.mulf %20, %20 : vector<128x128xf32>
      %cst_39 = arith.constant 0.000000e+00 : f32
      %65 = vector.broadcast %cst_39 : f32 to vector<128x128xf32>
      %66 = arith.select %62, %64, %65 : vector<128x128xi1>, vector<128x128xf32>
      %67 = vector.shape_cast %66 : vector<128x128xf32> to vector<1x128x128xf32>
      %cst_40 = arith.constant dense<0.000000e+00> : vector<1xf32>
      %68 = vector.multi_reduction <add>, %67, %cst_40 [1, 2] : vector<1x128x128xf32> to vector<1xf32>
      %69 = vector.shape_cast %68 : vector<1xf32> to vector<1x1x1xf32>
      %70 = vector.extract %69[0, 0, 0] : f32 from vector<1x1x1xf32>
      %71 = vector.broadcast %70 : f32 to vector<1x8x128xf32>
      %72 = arith.subf %63, %71 : vector<1x8x128xf32>
      %c0_41 = arith.constant 0 : index
      %c0_42 = arith.constant 0 : index
      %c0_43 = arith.constant 0 : index
      %73 = vector.load %arg10[%c0_41, %c0_42, %c0_43] : memref<1x8x128xf32, #tpu.memory_space<vmem>>, vector<1x8x128xf32>
      tpu.vector_store %arg10[%c0_41, %c0_42, %c0_43], %72 {strides = array<i32>} : memref<1x8x128xf32, #tpu.memory_space<vmem>>, vector<1x8x128xf32>,
    } else {
    }
    return
  }
  func.func @transform_0(%arg0: i32, %arg1: i32) -> i32 {
    %c0_i32 = arith.constant 0 : i32
    %c0_i32_0 = arith.constant 0 : i32
    return %c0_i32 : i32
  }
  func.func @transform_1(%arg0: i32, %arg1: i32) -> (i32, i32) {
    %c0_i32 = arith.constant 0 : i32
    %c0_i32_0 = arith.constant 0 : i32
    return %arg0, %c0_i32 : i32, i32
  }
  func.func @transform_2(%arg0: i32, %arg1: i32) -> (i32, i32) {
    %c0_i32 = arith.constant 0 : i32
    %c0_i32_0 = arith.constant 0 : i32
    return %arg1, %c0_i32 : i32, i32
  }
  func.func @transform_3(%arg0: i32, %arg1: i32) -> (i32, i32) {
    %c0_i32 = arith.constant 0 : i32
    %c0_i32_0 = arith.constant 0 : i32
    return %arg0, %c0_i32 : i32, i32
  }
  func.func @transform_4(%arg0: i32, %arg1: i32) -> (i32, i32) {
    %c0_i32 = arith.constant 0 : i32
    %c0_i32_0 = arith.constant 0 : i32
    return %c0_i32, %arg1 : i32, i32
  }
  func.func @transform_5(%arg0: i32, %arg1: i32) -> (i32, i32) {
    %c0_i32 = arith.constant 0 : i32
    %c0_i32_0 = arith.constant 0 : i32
    return %arg0, %c0_i32 : i32, i32
  }
  func.func @transform_6(%arg0: i32, %arg1: i32) -> (i32, i32) {
    %c0_i32 = arith.constant 0 : i32
    %c0_i32_0 = arith.constant 0 : i32
    return %arg1, %c0_i32 : i32, i32
  }
  func.func @transform_7(%arg0: i32, %arg1: i32) -> (i32, i32, i32) {
    %c0_i32 = arith.constant 0 : i32
    %c0_i32_0 = arith.constant 0 : i32
    %c0_i32_1 = arith.constant 0 : i32
    return %arg0, %c0_i32, %c0_i32_0 : i32, i32, i32
  }
  func.func @transform_8(%arg0: i32, %arg1: i32) -> (i32, i32, i32) {
    %c0_i32 = arith.constant 0 : i32
    %c0_i32_0 = arith.constant 0 : i32
    %c0_i32_1 = arith.constant 0 : i32
    return %arg0, %c0_i32, %c0_i32_0 : i32, i32, i32
  }
}

</mosaic_0001>

<llo_original>
// kernel: kta_loss.1
$region0: #{kta_loss.1}
  #allocation0 [shape = 'u32[]', space=smem, size = 0x4, offset = 0x4, fixed_abs, tag = 'smem constant byte address 0x4 - core index']
  #allocation1 [shape = 'u32[144,128]{1,0:T(1,128)}', space=vmem, size = 0x12000, scoped, tag = 'internal scratch']
  #allocation2 [shape = 'f32[1]{0:T(128)S(6)}', space=smem, size = 0x200, scoped, tag = 'scoped memory for kta_loss.1']
  %s0 = inlined_call_operand.<no memory space> [shape: f32[1], index: 0, kind: input, shape index: {}]
  %s1 = inlined_call_operand.vmem [shape: f32[256,32], index: 1, kind: input, shape index: {}, may-alias: {1,2}]
  %s2 = inlined_call_operand.vmem [shape: f32[256,32], index: 2, kind: input, shape index: {}, may-alias: {1,2}]
  %s3 = inlined_call_operand.vmem [shape: f32[256,1], index: 3, kind: input, shape index: {}]
  %s4 = inlined_call_operand.vmem [shape: f32[1,256], index: 4, kind: input, shape index: {}]
  %s5 = inlined_call_operand.vmem [shape: f32[256,1], index: 5, kind: input, shape index: {}, may-alias: {5,6}]
  %s6 = inlined_call_operand.vmem [shape: f32[256,1], index: 6, kind: input, shape index: {}, may-alias: {5,6}]
  %s7 = inlined_call_operand.vmem [shape: f32[2,8,128], index: 7, kind: output, shape index: {0}]
  %s8 = inlined_call_operand.vmem [shape: f32[2,8,128], index: 8, kind: output, shape index: {1}]
  %9 = xla_tuple %s7, %s8
  %s10 = sld [smem:[#allocation0]]
  $region81: #{kta_loss.1} parent=0
    _
  %s12 = ssub.s32 1, %s10
  %s13 = scalar_select 0, %s12, %s10
  %14 = sst [smem:[#allocation2]] %s0
  loop: start=0, step=1, limit=6
  $region2: #{kta_loss.1} parent=0 // loop_pre_header
    _
  $region3: #{kta_loss.1} parent=0 // loop_header
    %s16 = sphi 0, %s20
    %p17 = scmp.ge.s32.totalorder %s16, 6
    %s23 = sphi 0, %s35
    %s24 = sphi 0, %s31
    %s25 = sphi 0, %s23
    %s26 = sphi 0, %s24
    %s27 = sphi 0, %s25
    %s28 = sphi 0, %s26
    %s36 = sphi 0, %s36
    %s38 = sphi 0, %s36
    %s39 = sphi 0, %s38
    %s53 = sphi 0, %s39
    %s59 = sphi 0, %s61
    %s62 = sphi 0, %s59
    %s63 = sphi 0, %s62
    %s79 = sphi 0, %s63
    %s85 = sphi 0, %s87
    %s88 = sphi 0, %s85
    %s89 = sphi 0, %s88
    %s105 = sphi 0, %s89
    %s111 = sphi 0, %s113
    %s114 = sphi 0, %s111
    %s115 = sphi 0, %s114
    %s131 = sphi 0, %s115
    %s137 = sphi 0, %s139
    %s140 = sphi 0, %s137
    %s141 = sphi 0, %s140
    %s157 = sphi 0, %s141
    %s163 = sphi 0, %s165
    %s166 = sphi 0, %s163
    %s167 = sphi 0, %s166
    %s183 = sphi 0, %s167
    %s189 = sphi 0, %s191
    %s192 = sphi 0, %s189
    %s193 = sphi 0, %s192
    %s209 = sphi 0, %s193
    %s215 = sphi 0, %s217
    %s218 = sphi 0, %s215
    %s219 = sphi 0, %s218
    %s235 = sphi 0, %s219
    %s241 = sphi 0, %s243
    %s244 = sphi 0, %s241
    %s245 = sphi 0, %s244
    %s261 = sphi 0, %s245
  $region4: #{kta_loss.1} parent=0 // loop_header_branch
    %19 = sbr.rel (%p17) target = $region8
  $region5: #{kta_loss.1} parent=0 // loop_body
    %s21 = ssub.s32 %s16, 1
    %s22 = ssub.s32 %s16, 2
    %s29 = sadd.s32 1, %s24
    %p30 = scmp.ge.s32.totalorder %s29, 2
    %s31 = scalar_select %p30, 0, %s29
    %s32 = sadd.s32 1, %s23
    %s33 = scalar_select %p30, %s32, %s23
    %p34 = scmp.ge.s32.totalorder %s33, 2
    %s35 = scalar_select %p34, 0, %s33
    %s37 = sadd.s32 %s36, 1
    %p40 = scmp.eq.s32.totalorder %s16, 3
    %p41 = scmp.ne.s32.totalorder %s36, %s38
    %p42 = scmp.eq.s32.totalorder %s16, 0
    %p43 = por %p41, %p42
    %p44 = scmp.ne.s32.totalorder %s36, %s38
    %p45 = scmp.eq.s32.totalorder %s21, 3
    %p46 = por %p44, %p45
    %p47 = scmp.ne.s32.totalorder %s38, %s39
    %p48 = scmp.eq.s32.totalorder %s21, 0
    %p49 = por %p47, %p48
    %p50 = scmp.ne.s32.totalorder %s38, %s39
    %p51 = scmp.eq.s32.totalorder %s22, 3
    %p52 = por %p50, %p51
    %p54 = scmp.ne.s32.totalorder %s39, %s53
    %p55 = scmp.eq.s32.totalorder %s22, 0
    %p56 = por %p54, %p55
    %s57 = ssub.s32 %s23, %s35
    %p58 = scmp.eq.s32.totalorder %s57, 0
    %s60 = sadd.s32 %s59, 1
    %s61 = scalar_select %p58, %s59, %s60
    %p64 = pneg %p58
    %p65 = scmp.eq.s32.totalorder %s16, 3
    %p66 = por %p64, %p65
    %p67 = scmp.ne.s32.totalorder %s59, %s62
    %p68 = scmp.eq.s32.totalorder %s16, 0
    %p69 = por %p67, %p68
    %p70 = scmp.ne.s32.totalorder %s59, %s62
    %p71 = scmp.eq.s32.totalorder %s21, 3
    %p72 = por %p70, %p71
    %p73 = scmp.ne.s32.totalorder %s62, %s63
    %p74 = scmp.eq.s32.totalorder %s21, 0
    %p75 = por %p73, %p74
    %p76 = scmp.ne.s32.totalorder %s62, %s63
    %p77 = scmp.eq.s32.totalorder %s22, 3
    %p78 = por %p76, %p77
    %p80 = scmp.ne.s32.totalorder %s63, %s79
    %p81 = scmp.eq.s32.totalorder %s22, 0
    %p82 = por %p80, %p81
    %s83 = ssub.s32 %s24, %s31
    %p84 = scmp.eq.s32.totalorder %s83, 0
    %s86 = sadd.s32 %s85, 1
    %s87 = scalar_select %p84, %s85, %s86
    %p90 = pneg %p84
    %p91 = scmp.eq.s32.totalorder %s16, 3
    %p92 = por %p90, %p91
    %p93 = scmp.ne.s32.totalorder %s85, %s88
    %p94 = scmp.eq.s32.totalorder %s16, 0
    %p95 = por %p93, %p94
    %p96 = scmp.ne.s32.totalorder %s85, %s88
    %p97 = scmp.eq.s32.totalorder %s21, 3
    %p98 = por %p96, %p97
    %p99 = scmp.ne.s32.totalorder %s88, %s89
    %p100 = scmp.eq.s32.totalorder %s21, 0
    %p101 = por %p99, %p100
    %p102 = scmp.ne.s32.totalorder %s88, %s89
    %p103 = scmp.eq.s32.totalorder %s22, 3
    %p104 = por %p102, %p103
    %p106 = scmp.ne.s32.totalorder %s89, %s105
    %p107 = scmp.eq.s32.totalorder %s22, 0
    %p108 = por %p106, %p107
    %s109 = ssub.s32 %s23, %s35
    %p110 = scmp.eq.s32.totalorder %s109, 0
    %s112 = sadd.s32 %s111, 1
    %s113 = scalar_select %p110, %s111, %s112
    %p116 = pneg %p110
    %p117 = scmp.eq.s32.totalorder %s16, 3
    %p118 = por %p116, %p117
    %p119 = scmp.ne.s32.totalorder %s111, %s114
    %p120 = scmp.eq.s32.totalorder %s16, 0
    %p121 = por %p119, %p120
    %p122 = scmp.ne.s32.totalorder %s111, %s114
    %p123 = scmp.eq.s32.totalorder %s21, 3
    %p124 = por %p122, %p123
    %p125 = scmp.ne.s32.totalorder %s114, %s115
    %p126 = scmp.eq.s32.totalorder %s21, 0
    %p127 = por %p125, %p126
    %p128 = scmp.ne.s32.totalorder %s114, %s115
    %p129 = scmp.eq.s32.totalorder %s22, 3
    %p130 = por %p128, %p129
    %p132 = scmp.ne.s32.totalorder %s115, %s131
    %p133 = scmp.eq.s32.totalorder %s22, 0
    %p134 = por %p132, %p133
    %s135 = ssub.s32 %s24, %s31
    %p136 = scmp.eq.s32.totalorder %s135, 0
    %s138 = sadd.s32 %s137, 1
    %s139 = scalar_select %p136, %s137, %s138
    %p142 = pneg %p136
    %p143 = scmp.eq.s32.totalorder %s16, 3
    %p144 = por %p142, %p143
    %p145 = scmp.ne.s32.totalorder %s137, %s140
    %p146 = scmp.eq.s32.totalorder %s16, 0
    %p147 = por %p145, %p146
    %p148 = scmp.ne.s32.totalorder %s137, %s140
    %p149 = scmp.eq.s32.totalorder %s21, 3
    %p150 = por %p148, %p149
    %p151 = scmp.ne.s32.totalorder %s140, %s141
    %p152 = scmp.eq.s32.totalorder %s21, 0
    %p153 = por %p151, %p152
    %p154 = scmp.ne.s32.totalorder %s140, %s141
    %p155 = scmp.eq.s32.totalorder %s22, 3
    %p156 = por %p154, %p155
    %p158 = scmp.ne.s32.totalorder %s141, %s157
    %p159 = scmp.eq.s32.totalorder %s22, 0
    %p160 = por %p158, %p159
    %s161 = ssub.s32 %s23, %s35
    %p162 = scmp.eq.s32.totalorder %s161, 0
    %s164 = sadd.s32 %s163, 1
    %s165 = scalar_select %p162, %s163, %s164
    %p168 = pneg %p162
    %p169 = scmp.eq.s32.totalorder %s16, 3
    %p170 = por %p168, %p169
    %p171 = scmp.ne.s32.totalorder %s163, %s166
    %p172 = scmp.eq.s32.totalorder %s16, 0
    %p173 = por %p171, %p172
    %p174 = scmp.ne.s32.totalorder %s163, %s166
    %p175 = scmp.eq.s32.totalorder %s21, 3
    %p176 = por %p174, %p175
    %p177 = scmp.ne.s32.totalorder %s166, %s167
    %p178 = scmp.eq.s32.totalorder %s21, 0
    %p179 = por %p177, %p178
    %p180 = scmp.ne.s32.totalorder %s166, %s167
    %p181 = scmp.eq.s32.totalorder %s22, 3
    %p182 = por %p180, %p181
    %p184 = scmp.ne.s32.totalorder %s167, %s183
    %p185 = scmp.eq.s32.totalorder %s22, 0
    %p186 = por %p184, %p185
    %s187 = ssub.s32 %s24, %s31
    %p188 = scmp.eq.s32.totalorder %s187, 0
    %s190 = sadd.s32 %s189, 1
    %s191 = scalar_select %p188, %s189, %s190
    %p194 = pneg %p188
    %p195 = scmp.eq.s32.totalorder %s16, 3
    %p196 = por %p194, %p195
    %p197 = scmp.ne.s32.totalorder %s189, %s192
    %p198 = scmp.eq.s32.totalorder %s16, 0
    %p199 = por %p197, %p198
    %p200 = scmp.ne.s32.totalorder %s189, %s192
    %p201 = scmp.eq.s32.totalorder %s21, 3
    %p202 = por %p200, %p201
    %p203 = scmp.ne.s32.totalorder %s192, %s193
    %p204 = scmp.eq.s32.totalorder %s21, 0
    %p205 = por %p203, %p204
    %p206 = scmp.ne.s32.totalorder %s192, %s193
    %p207 = scmp.eq.s32.totalorder %s22, 3
    %p208 = por %p206, %p207
    %p210 = scmp.ne.s32.totalorder %s193, %s209
    %p211 = scmp.eq.s32.totalorder %s22, 0
    %p212 = por %p210, %p211
    %s213 = ssub.s32 %s23, %s35
    %p214 = scmp.eq.s32.totalorder %s213, 0
    %s216 = sadd.s32 %s215, 1
    %s217 = scalar_select %p214, %s215, %s216
    %p220 = pneg %p214
    %p221 = scmp.eq.s32.totalorder %s16, 3
    %p222 = por %p220, %p221
    %p223 = scmp.ne.s32.totalorder %s215, %s218
    %p224 = scmp.eq.s32.totalorder %s16, 0
    %p225 = por %p223, %p224
    %p226 = scmp.ne.s32.totalorder %s215, %s218
    %p227 = scmp.eq.s32.totalorder %s21, 3
    %p228 = por %p226, %p227
    %p229 = scmp.ne.s32.totalorder %s218, %s219
    %p230 = scmp.eq.s32.totalorder %s21, 0
    %p231 = por %p229, %p230
    %p232 = scmp.ne.s32.totalorder %s218, %s219
    %p233 = scmp.eq.s32.totalorder %s22, 3
    %p234 = por %p232, %p233
    %p236 = scmp.ne.s32.totalorder %s219, %s235
    %p237 = scmp.eq.s32.totalorder %s22, 0
    %p238 = por %p236, %p237
    %s239 = ssub.s32 %s23, %s35
    %p240 = scmp.eq.s32.totalorder %s239, 0
    %s242 = sadd.s32 %s241, 1
    %s243 = scalar_select %p240, %s241, %s242
    %p246 = pneg %p240
    %p247 = scmp.eq.s32.totalorder %s16, 3
    %p248 = por %p246, %p247
    %p249 = scmp.ne.s32.totalorder %s241, %s244
    %p250 = scmp.eq.s32.totalorder %s16, 0
    %p251 = por %p249, %p250
    %p252 = scmp.ne.s32.totalorder %s241, %s244
    %p253 = scmp.eq.s32.totalorder %s21, 3
    %p254 = por %p252, %p253
    %p255 = scmp.ne.s32.totalorder %s244, %s245
    %p256 = scmp.eq.s32.totalorder %s21, 0
    %p257 = por %p255, %p256
    %p258 = scmp.ne.s32.totalorder %s244, %s245
    %p259 = scmp.eq.s32.totalorder %s22, 3
    %p260 = por %p258, %p259
    %p262 = scmp.ne.s32.totalorder %s245, %s261
    %p263 = scmp.eq.s32.totalorder %s22, 0
    %p264 = por %p262, %p263
    %p265 = scmp.le.s32.totalorder 1, %s16
    %p266 = scmp.lt.s32.totalorder %s16, 5
    %p267 = pnand %p265, %p266
    %p268 = pneg %p267
    // Predicated region
    $region9: #{kta_loss.1} parent=5 // pred_check
      _
    $region10: #{kta_loss.1} parent=5 // pred_check_branch
      %270 = sbr.rel (%p267) target = $region12
    $region11: #{kta_loss.1} parent=5 // pred_region
      %s271 = ssub.s32 %s16, 1
      // Predicated region
      $region13: #{kta_loss.1} parent=11 // pred_check
        %p272 = pneg %p49
      $region14: #{kta_loss.1} parent=11 // pred_check_branch
        %274 = sbr.rel (%p272) target = $region16
      $region15: #{kta_loss.1} parent=11 // pred_region
        _
      $region16: #{kta_loss.1} parent=11 // pred_fallthru
        _
    $region12: #{kta_loss.1} parent=5 // pred_fallthru
      _
    %p275 = scmp.lt.s32.totalorder %s16, 4
    // Predicated region
    $region17: #{kta_loss.1} parent=5 // pred_check
      %p276 = pneg %p275
    $region18: #{kta_loss.1} parent=5 // pred_check_branch
      %278 = sbr.rel (%p276) target = $region20
    $region19: #{kta_loss.1} parent=5 // pred_region
      // Predicated region
      $region21: #{kta_loss.1} parent=19 // pred_check
        %p279 = pneg %p69
      $region22: #{kta_loss.1} parent=19 // pred_check_branch
        %281 = sbr.rel (%p279) target = $region24
      $region23: #{kta_loss.1} parent=19 // pred_region
        %s282 = smul.u32 16, %s23
        %p283 = scmp.lt.s32.totalorder %s282, 31
        %s284 = scalar_select %p283, %s282, 31
        %s285 = smul.addr %s284, 8
        %s286 = scalar_lea.vmem %s1, %s285
        %s287 = smul.u32 16, %s23
      $region24: #{kta_loss.1} parent=19 // pred_fallthru
        _
      // Predicated region
      $region25: #{kta_loss.1} parent=19 // pred_check
        %p288 = pneg %p95
      $region26: #{kta_loss.1} parent=19 // pred_check_branch
        %290 = sbr.rel (%p288) target = $region28
      $region27: #{kta_loss.1} parent=19 // pred_region
        %s291 = smul.u32 16, %s24
        %p292 = scmp.lt.s32.totalorder %s291, 31
        %s293 = scalar_select %p292, %s291, 31
        %s294 = smul.addr %s293, 8
        %s295 = scalar_lea.vmem %s2, %s294
        %s296 = smul.u32 16, %s24
      $region28: #{kta_loss.1} parent=19 // pred_fallthru
        _
      // Predicated region
      $region29: #{kta_loss.1} parent=19 // pred_check
        %p297 = pneg %p121
      $region30: #{kta_loss.1} parent=19 // pred_check_branch
        %299 = sbr.rel (%p297) target = $region32
      $region31: #{kta_loss.1} parent=19 // pred_region
        %s300 = smul.u32 16, %s23
        %p301 = scmp.lt.s32.totalorder %s300, 31
        %s302 = scalar_select %p301, %s300, 31
        %s303 = smul.addr %s302, 8
        %s304 = scalar_lea.vmem %s3, %s303
        %s305 = smul.u32 16, %s23
      $region32: #{kta_loss.1} parent=19 // pred_fallthru
        _
      // Predicated region
      $region33: #{kta_loss.1} parent=19 // pred_check
        %p306 = pneg %p147
      $region34: #{kta_loss.1} parent=19 // pred_check_branch
        %308 = sbr.rel (%p306) target = $region36
      $region35: #{kta_loss.1} parent=19 // pred_region
        %p309 = scmp.lt.s32.totalorder %s24, 1
        %s310 = scalar_select %p309, %s24, 1
        %s311 = scalar_lea.vmem %s4, %s310
      $region36: #{kta_loss.1} parent=19 // pred_fallthru
        _
      // Predicated region
      $region37: #{kta_loss.1} parent=19 // pred_check
        %p312 = pneg %p173
      $region38: #{kta_loss.1} parent=19 // pred_check_branch
        %314 = sbr.rel (%p312) target = $region40
      $region39: #{kta_loss.1} parent=19 // pred_region
        %s315 = smul.u32 16, %s23
        %p316 = scmp.lt.s32.totalorder %s315, 31
        %s317 = scalar_select %p316, %s315, 31
        %s318 = smul.addr %s317, 8
        %s319 = scalar_lea.vmem %s5, %s318
        %s320 = smul.u32 16, %s23
      $region40: #{kta_loss.1} parent=19 // pred_fallthru
        _
      // Predicated region
      $region41: #{kta_loss.1} parent=19 // pred_check
        %p321 = pneg %p199
      $region42: #{kta_loss.1} parent=19 // pred_check_branch
        %323 = sbr.rel (%p321) target = $region44
      $region43: #{kta_loss.1} parent=19 // pred_region
        %s324 = smul.u32 16, %s24
        %p325 = scmp.lt.s32.totalorder %s324, 31
        %s326 = scalar_select %p325, %s324, 31
        %s327 = smul.addr %s326, 8
        %s328 = scalar_lea.vmem %s6, %s327
        %s329 = smul.u32 16, %s24
      $region44: #{kta_loss.1} parent=19 // pred_fallthru
        _
    $region20: #{kta_loss.1} parent=5 // pred_fallthru
      _
    %p330 = scmp.le.s32.totalorder 1, %s16
    %p331 = scmp.lt.s32.totalorder %s16, 5
    %p332 = pnand %p330, %p331
    %p333 = pneg %p332
    // Predicated region
    $region45: #{kta_loss.1} parent=5 // pred_check
      _
    $region46: #{kta_loss.1} parent=5 // pred_check_branch
      %335 = sbr.rel (%p332) target = $region48
    $region47: #{kta_loss.1} parent=5 // pred_region
      %s336 = ssub.s32 %s16, 1
      %p337 = pneg %p49
      %p338 = pneg %p46
      %s339 = smul.u32 16, %s25
      %p340 = scmp.lt.s32.totalorder %s339, 31
      %s341 = scalar_select %p340, %s339, 31
      %s342 = smul.addr %s341, 8
      %s343 = scalar_lea.vmem %s1, %s342
      %p344 = pneg %p75
      %p345 = pneg %p72
      %s346 = smul.u32 16, %s26
      %p347 = scmp.lt.s32.totalorder %s346, 31
      %s348 = scalar_select %p347, %s346, 31
      %s349 = smul.addr %s348, 8
      %s350 = scalar_lea.vmem %s2, %s349
      %p351 = pneg %p101
      %p352 = pneg %p98
      %s353 = smul.u32 16, %s25
      %p354 = scmp.lt.s32.totalorder %s353, 31
      %s355 = scalar_select %p354, %s353, 31
      %s356 = smul.addr %s355, 8
      %s357 = scalar_lea.vmem %s3, %s356
      %p358 = pneg %p127
      %p359 = pneg %p124
      %p360 = scmp.lt.s32.totalorder %s26, 1
      %s361 = scalar_select %p360, %s26, 1
      %s362 = scalar_lea.vmem %s4, %s361
      %p363 = pneg %p153
      %p364 = pneg %p150
      %s365 = smul.u32 16, %s25
      %p366 = scmp.lt.s32.totalorder %s365, 31
      %s367 = scalar_select %p366, %s365, 31
      %s368 = smul.addr %s367, 8
      %s369 = scalar_lea.vmem %s5, %s368
      %p370 = pneg %p179
      %p371 = pneg %p176
      %s372 = smul.u32 16, %s26
      %p373 = scmp.lt.s32.totalorder %s372, 31
      %s374 = scalar_select %p373, %s372, 31
      %s375 = smul.addr %s374, 8
      %s376 = scalar_lea.vmem %s6, %s375
      %p377 = pneg %p205
      %p378 = pneg %p202
      %p379 = pneg %p231
      %p380 = pneg %p228
      %p381 = scmp.lt.s32.totalorder %s25, 1
      %s382 = scalar_select %p381, %s25, 1
      %s383 = smul.addr %s382, 8
      %s384 = scalar_lea.vmem %s7, %s383
      %p385 = pneg %p257
      %p386 = pneg %p254
      %p387 = scmp.lt.s32.totalorder %s25, 1
      %s388 = scalar_select %p387, %s25, 1
      %s389 = smul.addr %s388, 8
      %s390 = scalar_lea.vmem %s8, %s389
      %s391 = smul.u32 16, %s25
      %p392 = scmp.lt.s32.totalorder %s391, 31
      %s393 = scalar_select %p392, %s391, 31
      %s394 = smul.addr %s393, 8
      %s395 = scalar_lea.vmem %s1, %s394
      %s396 = smul.u32 16, %s25
      %s397 = smul.u32 16, %s26
      %p398 = scmp.lt.s32.totalorder %s397, 31
      %s399 = scalar_select %p398, %s397, 31
      %s400 = smul.addr %s399, 8
      %s401 = scalar_lea.vmem %s2, %s400
      %s402 = smul.u32 16, %s26
      %s403 = smul.u32 16, %s25
      %p404 = scmp.lt.s32.totalorder %s403, 31
      %s405 = scalar_select %p404, %s403, 31
      %s406 = smul.addr %s405, 8
      %s407 = scalar_lea.vmem %s3, %s406
      %s408 = smul.u32 16, %s25
      %p409 = scmp.lt.s32.totalorder %s26, 1
      %s410 = scalar_select %p409, %s26, 1
      %s411 = scalar_lea.vmem %s4, %s410
      %s412 = smul.u32 16, %s25
      %p413 = scmp.lt.s32.totalorder %s412, 31
      %s414 = scalar_select %p413, %s412, 31
      %s415 = smul.addr %s414, 8
      %s416 = scalar_lea.vmem %s5, %s415
      %s417 = smul.u32 16, %s25
      %s418 = smul.u32 16, %s26
      %p419 = scmp.lt.s32.totalorder %s418, 31
      %s420 = scalar_select %p419, %s418, 31
      %s421 = smul.addr %s420, 8
      %s422 = scalar_lea.vmem %s6, %s421
      %s423 = smul.u32 16, %s26
      %p424 = scmp.lt.s32.totalorder %s25, 1
      %s425 = scalar_select %p424, %s25, 1
      %s426 = smul.addr %s425, 8
      %s427 = scalar_lea.vmem %s7, %s426
      %p428 = scmp.lt.s32.totalorder %s25, 1
      %s429 = scalar_select %p428, %s25, 1
      %s430 = smul.addr %s429, 8
      %s431 = scalar_lea.vmem %s8, %s430
      %p432 = scmp.eq.s32.totalorder %s26, 0
      // Predicated region
      $region49: #{kta_loss.1} parent=47 // pred_check
        %p433 = pneg %p432
      $region50: #{kta_loss.1} parent=47 // pred_check_branch
        %435 = sbr.rel (%p433) target = $region52
      $region51: #{kta_loss.1} parent=47 // pred_region
        %436 = vst [vmem:[%s427] sm:$0xff] 0.0
        %437 = vst [vmem:[%s431] sm:$0xff] 0.0
      $region52: #{kta_loss.1} parent=47 // pred_fallthru
        _
      %s438 = sld [smem:[#allocation2]]
      %v439 = vld [vmem:[%s395] sm:$0xff]
      %v440 = vld [vmem:[%s395 + $0x8] sm:$0xff]
      %v441 = vld [vmem:[%s395 + $0x10] sm:$0xff]
      %v442 = vld [vmem:[%s395 + $0x18] sm:$0xff]
      %v443 = vld [vmem:[%s395 + $0x20] sm:$0xff]
      %v444 = vld [vmem:[%s395 + $0x28] sm:$0xff]
      %v445 = vld [vmem:[%s395 + $0x30] sm:$0xff]
      %v446 = vld [vmem:[%s395 + $0x38] sm:$0xff]
      %v447 = vld [vmem:[%s395 + $0x40] sm:$0xff]
      %v448 = vld [vmem:[%s395 + $0x48] sm:$0xff]
      %v449 = vld [vmem:[%s395 + $0x50] sm:$0xff]
      %v450 = vld [vmem:[%s395 + $0x58] sm:$0xff]
      %v451 = vld [vmem:[%s395 + $0x60] sm:$0xff]
      %v452 = vld [vmem:[%s395 + $0x68] sm:$0xff]
      %v453 = vld [vmem:[%s395 + $0x70] sm:$0xff]
      %v454 = vld [vmem:[%s395 + $0x78] sm:$0xff]
      %v455 = vld [vmem:[%s401] sm:$0xff]
      %v456 = vld [vmem:[%s401 + $0x8] sm:$0xff]
      %v457 = vld [vmem:[%s401 + $0x10] sm:$0xff]
      %v458 = vld [vmem:[%s401 + $0x18] sm:$0xff]
      %v459 = vld [vmem:[%s401 + $0x20] sm:$0xff]
      %v460 = vld [vmem:[%s401 + $0x28] sm:$0xff]
      %v461 = vld [vmem:[%s401 + $0x30] sm:$0xff]
      %v462 = vld [vmem:[%s401 + $0x38] sm:$0xff]
      %v463 = vld [vmem:[%s401 + $0x40] sm:$0xff]
      %v464 = vld [vmem:[%s401 + $0x48] sm:$0xff]
      %v465 = vld [vmem:[%s401 + $0x50] sm:$0xff]
      %v466 = vld [vmem:[%s401 + $0x58] sm:$0xff]
      %v467 = vld [vmem:[%s401 + $0x60] sm:$0xff]
      %v468 = vld [vmem:[%s401 + $0x68] sm:$0xff]
      %v469 = vld [vmem:[%s401 + $0x70] sm:$0xff]
      %v470 = vld [vmem:[%s401 + $0x78] sm:$0xff]
      %vm471 = vcmask 261120
      %v473 = vsel %vm471, %v439, 0
      %v476 = vsel %vm471, %v440, 0
      %v479 = vsel %vm471, %v441, 0
      %v482 = vsel %vm471, %v442, 0
      %v485 = vsel %vm471, %v443, 0
      %v488 = vsel %vm471, %v444, 0
      %v491 = vsel %vm471, %v445, 0
      %v494 = vsel %vm471, %v446, 0
      %v497 = vsel %vm471, %v447, 0
      %v500 = vsel %vm471, %v448, 0
      %v503 = vsel %vm471, %v449, 0
      %v506 = vsel %vm471, %v450, 0
      %v509 = vsel %vm471, %v451, 0
      %v512 = vsel %vm471, %v452, 0
      %v515 = vsel %vm471, %v453, 0
      %v518 = vsel %vm471, %v454, 0
      %v521 = vsel %vm471, %v455, 0
      %v524 = vsel %vm471, %v456, 0
      %v527 = vsel %vm471, %v457, 0
      %v530 = vsel %vm471, %v458, 0
      %v533 = vsel %vm471, %v459, 0
      %v536 = vsel %vm471, %v460, 0
      %v539 = vsel %vm471, %v461, 0
      %v542 = vsel %vm471, %v462, 0
      %v545 = vsel %vm471, %v463, 0
      %v548 = vsel %vm471, %v464, 0
      %v551 = vsel %vm471, %v465, 0
      %v554 = vsel %vm471, %v466, 0
      %v557 = vsel %vm471, %v467, 0
      %v560 = vsel %vm471, %v468, 0
      %v563 = vsel %vm471, %v469, 0
      %v566 = vsel %vm471, %v470, 0
      %568 = vmatprep.subr.mxu0 0.0
      %569 = vmatpush1.xpose.msra.mxu0 %v566
      %570 = vmatprep.subr.mxu0 0.0
      %571 = vmatpush1.xpose.msra.mxu0 %v563
      %572 = vmatprep.subr.mxu0 0.0
      %573 = vmatpush1.xpose.msra.mxu0 %v560
      %574 = vmatprep.subr.mxu0 0.0
      %575 = vmatpush1.xpose.msra.mxu0 %v557
      %576 = vmatprep.subr.mxu0 0.0
      %577 = vmatpush1.xpose.msra.mxu0 %v554
      %578 = vmatprep.subr.mxu0 0.0
      %579 = vmatpush1.xpose.msra.mxu0 %v551
      %580 = vmatprep.subr.mxu0 0.0
      %581 = vmatpush1.xpose.msra.mxu0 %v548
      %582 = vmatprep.subr.mxu0 0.0
      %583 = vmatpush1.xpose.msra.mxu0 %v545
      %584 = vmatprep.subr.mxu0 0.0
      %585 = vmatpush1.xpose.msra.mxu0 %v542
      %586 = vmatprep.subr.mxu0 0.0
      %587 = vmatpush1.xpose.msra.mxu0 %v539
      %588 = vmatprep.subr.mxu0 0.0
      %589 = vmatpush1.xpose.msra.mxu0 %v536
      %590 = vmatprep.subr.mxu0 0.0
      %591 = vmatpush1.xpose.msra.mxu0 %v533
      %592 = vmatprep.subr.mxu0 0.0
      %593 = vmatpush1.xpose.msra.mxu0 %v530
      %594 = vmatprep.subr.mxu0 0.0
      %595 = vmatpush1.xpose.msra.mxu0 %v527
      %596 = vmatprep.subr.mxu0 0.0
      %597 = vmatpush1.xpose.msra.mxu0 %v524
      %598 = vmatprep.subr.mxu0 0.0
      %599 = vmatpush1.xpose.msra.mxu0 %v521
      %600 = vmatprep.subr.mxu0 0.0
      %601 = vmatpush2.xpose.msra.mxu0 0.0
      %602 = vmatprep.subr.mxu0 0.0
      %603 = vmatpush2.xpose.msra.mxu0 0.0
      %604 = vmatprep.subr.mxu0 0.0
      %605 = vmatpush2.xpose.msra.mxu0 0.0
      %606 = vmatprep.subr.mxu0 0.0
      %607 = vmatpush2.xpose.msra.mxu0 0.0
      %608 = vmatprep.subr.mxu0 0.0
      %609 = vmatpush2.xpose.msra.mxu0 0.0
      %610 = vmatprep.subr.mxu0 0.0
      %611 = vmatpush2.xpose.msra.mxu0 0.0
      %612 = vmatprep.subr.mxu0 0.0
      %613 = vmatpush2.xpose.msra.mxu0 0.0
      %614 = vmatprep.subr.mxu0 0.0
      %615 = vmatpush2.xpose.msra.mxu0 0.0
      %616 = vmatprep.subr.mxu0 0.0
      %617 = vmatpush2.xpose.msra.mxu0 0.0
      %618 = vmatprep.subr.mxu0 0.0
      %619 = vmatpush2.xpose.msra.mxu0 0.0
      %620 = vmatprep.subr.mxu0 0.0
      %621 = vmatpush2.xpose.msra.mxu0 0.0
      %622 = vmatprep.subr.mxu0 0.0
      %623 = vmatpush2.xpose.msra.mxu0 0.0
      %624 = vmatprep.subr.mxu0 0.0
      %625 = vmatpush2.xpose.msra.mxu0 0.0
      %626 = vmatprep.subr.mxu0 0.0
      %627 = vmatpush2.xpose.msra.mxu0 0.0
      %628 = vmatprep.subr.mxu0 0.0
      %629 = vmatpush2.xpose.msra.mxu0 0.0
      %630 = vmatprep.subr.mxu0 0.0
      %631 = vmatpush2.xpose.msra.mxu0 0.0
      %632 = vmatprep.mubr.f32.mxu0 0.0
      %633 = vmatmul.mubr.f32.gmra.mxu0 %v473
      %v634 = vpop.f32.mrf.mxu0
      %v635 = vadd.f32 0.0, %v634
      %v636 = vpop.f32.mrf.mxu0
      %637 = vmatprep.mubr.f32.mxu0 0.0
      %638 = vmatmul.mubr.f32.gmra.mxu0 %v476
      %v639 = vpop.f32.mrf.mxu0
      %v640 = vadd.f32 0.0, %v639
      %v641 = vpop.f32.mrf.mxu0
      %642 = vmatprep.mubr.f32.mxu0 0.0
      %643 = vmatmul.mubr.f32.gmra.mxu0 %v479
      %v644 = vpop.f32.mrf.mxu0
      %v645 = vadd.f32 0.0, %v644
      %v646 = vpop.f32.mrf.mxu0
      %647 = vmatprep.mubr.f32.mxu0 0.0
      %648 = vmatmul.mubr.f32.gmra.mxu0 %v482
      %v649 = vpop.f32.mrf.mxu0
      %v650 = vadd.f32 0.0, %v649
      %v651 = vpop.f32.mrf.mxu0
      %652 = vmatprep.mubr.f32.mxu0 0.0
      %653 = vmatmul.mubr.f32.gmra.mxu0 %v485
      %v654 = vpop.f32.mrf.mxu0
      %v655 = vadd.f32 0.0, %v654
      %v656 = vpop.f32.mrf.mxu0
      %657 = vmatprep.mubr.f32.mxu0 0.0
      %658 = vmatmul.mubr.f32.gmra.mxu0 %v488
      %v659 = vpop.f32.mrf.mxu0
      %v660 = vadd.f32 0.0, %v659
      %v661 = vpop.f32.mrf.mxu0
      %662 = vmatprep.mubr.f32.mxu0 0.0
      %663 = vmatmul.mubr.f32.gmra.mxu0 %v491
      %v664 = vpop.f32.mrf.mxu0
      %v665 = vadd.f32 0.0, %v664
      %v666 = vpop.f32.mrf.mxu0
      %667 = vmatprep.mubr.f32.mxu0 0.0
      %668 = vmatmul.mubr.f32.gmra.mxu0 %v494
      %v669 = vpop.f32.mrf.mxu0
      %v670 = vadd.f32 0.0, %v669
      %v671 = vpop.f32.mrf.mxu0
      %672 = vmatprep.mubr.f32.mxu0 0.0
      %673 = vmatmul.mubr.f32.gmra.mxu0 %v497
      %v674 = vpop.f32.mrf.mxu0
      %v675 = vadd.f32 0.0, %v674
      %v676 = vpop.f32.mrf.mxu0
      %677 = vmatprep.mubr.f32.mxu0 0.0
      %678 = vmatmul.mubr.f32.gmra.mxu0 %v500
      %v679 = vpop.f32.mrf.mxu0
      %v680 = vadd.f32 0.0, %v679
      %v681 = vpop.f32.mrf.mxu0
      %682 = vmatprep.mubr.f32.mxu0 0.0
      %683 = vmatmul.mubr.f32.gmra.mxu0 %v503
      %v684 = vpop.f32.mrf.mxu0
      %v685 = vadd.f32 0.0, %v684
      %v686 = vpop.f32.mrf.mxu0
      %687 = vmatprep.mubr.f32.mxu0 0.0
      %688 = vmatmul.mubr.f32.gmra.mxu0 %v506
      %v689 = vpop.f32.mrf.mxu0
      %v690 = vadd.f32 0.0, %v689
      %v691 = vpop.f32.mrf.mxu0
      %692 = vmatprep.mubr.f32.mxu0 0.0
      %693 = vmatmul.mubr.f32.gmra.mxu0 %v509
      %v694 = vpop.f32.mrf.mxu0
      %v695 = vadd.f32 0.0, %v694
      %v696 = vpop.f32.mrf.mxu0
      %697 = vmatprep.mubr.f32.mxu0 0.0
      %698 = vmatmul.mubr.f32.gmra.mxu0 %v512
      %v699 = vpop.f32.mrf.mxu0
      %v700 = vadd.f32 0.0, %v699
      %v701 = vpop.f32.mrf.mxu0
      %702 = vmatprep.mubr.f32.mxu0 0.0
      %703 = vmatmul.mubr.f32.gmra.mxu0 %v515
      %v704 = vpop.f32.mrf.mxu0
      %v705 = vadd.f32 0.0, %v704
      %v706 = vpop.f32.mrf.mxu0
      %707 = vmatprep.mubr.f32.mxu0 0.0
      %708 = vmatmul.mubr.f32.gmra.mxu0 %v518
      %v709 = vpop.f32.mrf.mxu0
      %v710 = vadd.f32 0.0, %v709
      %v711 = vpop.f32.mrf.mxu0
      %712 = vdwg.mxu0
      %v713 = vld [vmem:[%s407] sm:$0xff]
      %v714 = vld [vmem:[%s407 + $0x8] sm:$0xff]
      %v715 = vld [vmem:[%s407 + $0x10] sm:$0xff]
      %v716 = vld [vmem:[%s407 + $0x18] sm:$0xff]
      %v717 = vld [vmem:[%s407 + $0x20] sm:$0xff]
      %v718 = vld [vmem:[%s407 + $0x28] sm:$0xff]
      %v719 = vld [vmem:[%s407 + $0x30] sm:$0xff]
      %v720 = vld [vmem:[%s407 + $0x38] sm:$0xff]
      %v721 = vld [vmem:[%s407 + $0x40] sm:$0xff]
      %v722 = vld [vmem:[%s407 + $0x48] sm:$0xff]
      %v723 = vld [vmem:[%s407 + $0x50] sm:$0xff]
      %v724 = vld [vmem:[%s407 + $0x58] sm:$0xff]
      %v725 = vld [vmem:[%s407 + $0x60] sm:$0xff]
      %v726 = vld [vmem:[%s407 + $0x68] sm:$0xff]
      %v727 = vld [vmem:[%s407 + $0x70] sm:$0xff]
      %v728 = vld [vmem:[%s407 + $0x78] sm:$0xff]
      %v729 = vld [vmem:[%s411] sm:$0x1]
      %731 = vset.pattern.permute.xlu0 0
      %732 = vperm.xlu0 %731, %v713
      %v733 = vpop.permute.xlu0 %732
      %736 = vset.pattern.permute.xlu0 0
      %737 = vperm.xlu0 %736, %v714
      %v738 = vpop.permute.xlu0 %737
      %741 = vset.pattern.permute.xlu0 0
      %742 = vperm.xlu0 %741, %v715
      %v743 = vpop.permute.xlu0 %742
      %746 = vset.pattern.permute.xlu0 0
      %747 = vperm.xlu0 %746, %v716
      %v748 = vpop.permute.xlu0 %747
      %751 = vset.pattern.permute.xlu0 0
      %752 = vperm.xlu0 %751, %v717
      %v753 = vpop.permute.xlu0 %752
      %756 = vset.pattern.permute.xlu0 0
      %757 = vperm.xlu0 %756, %v718
      %v758 = vpop.permute.xlu0 %757
      %761 = vset.pattern.permute.xlu0 0
      %762 = vperm.xlu0 %761, %v719
      %v763 = vpop.permute.xlu0 %762
      %766 = vset.pattern.permute.xlu0 0
      %767 = vperm.xlu0 %766, %v720
      %v768 = vpop.permute.xlu0 %767
      %771 = vset.pattern.permute.xlu0 0
      %772 = vperm.xlu0 %771, %v721
      %v773 = vpop.permute.xlu0 %772
      %776 = vset.pattern.permute.xlu0 0
      %777 = vperm.xlu0 %776, %v722
      %v778 = vpop.permute.xlu0 %777
      %781 = vset.pattern.permute.xlu0 0
      %782 = vperm.xlu0 %781, %v723
      %v783 = vpop.permute.xlu0 %782
      %786 = vset.pattern.permute.xlu0 0
      %787 = vperm.xlu0 %786, %v724
      %v788 = vpop.permute.xlu0 %787
      %791 = vset.pattern.permute.xlu0 0
      %792 = vperm.xlu0 %791, %v725
      %v793 = vpop.permute.xlu0 %792
      %796 = vset.pattern.permute.xlu0 0
      %797 = vperm.xlu0 %796, %v726
      %v798 = vpop.permute.xlu0 %797
      %801 = vset.pattern.permute.xlu0 0
      %802 = vperm.xlu0 %801, %v727
      %v803 = vpop.permute.xlu0 %802
      %806 = vset.pattern.permute.xlu0 0
      %807 = vperm.xlu0 %806, %v728
      %v808 = vpop.permute.xlu0 %807
      %v811 = vlaneseq
      %v812 = vshrl.u32 %v811, 7
      %v813 = vsub.s32 0, %v812
      %v814 = vrot.slane %v729, %v813
      %v816 = vadd.f32 %v733, %v814
      %v817 = vadd.f32 %v738, %v814
      %v818 = vadd.f32 %v743, %v814
      %v819 = vadd.f32 %v748, %v814
      %v820 = vadd.f32 %v753, %v814
      %v821 = vadd.f32 %v758, %v814
      %v822 = vadd.f32 %v763, %v814
      %v823 = vadd.f32 %v768, %v814
      %v824 = vadd.f32 %v773, %v814
      %v825 = vadd.f32 %v778, %v814
      %v826 = vadd.f32 %v783, %v814
      %v827 = vadd.f32 %v788, %v814
      %v828 = vadd.f32 %v793, %v814
      %v829 = vadd.f32 %v798, %v814
      %v830 = vadd.f32 %v803, %v814
      %v831 = vadd.f32 %v808, %v814
      %v832 = vmul.f32 %v635, 2.0
      %v833 = vmul.f32 %v640, 2.0
      %v834 = vmul.f32 %v645, 2.0
      %v835 = vmul.f32 %v650, 2.0
      %v836 = vmul.f32 %v655, 2.0
      %v837 = vmul.f32 %v660, 2.0
      %v838 = vmul.f32 %v665, 2.0
      %v839 = vmul.f32 %v670, 2.0
      %v840 = vmul.f32 %v675, 2.0
      %v841 = vmul.f32 %v680, 2.0
      %v842 = vmul.f32 %v685, 2.0
      %v843 = vmul.f32 %v690, 2.0
      %v844 = vmul.f32 %v695, 2.0
      %v845 = vmul.f32 %v700, 2.0
      %v846 = vmul.f32 %v705, 2.0
      %v847 = vmul.f32 %v710, 2.0
      %v848 = vsub.f32 %v816, %v832
      %v849 = vsub.f32 %v817, %v833
      %v850 = vsub.f32 %v818, %v834
      %v851 = vsub.f32 %v819, %v835
      %v852 = vsub.f32 %v820, %v836
      %v853 = vsub.f32 %v821, %v837
      %v854 = vsub.f32 %v822, %v838
      %v855 = vsub.f32 %v823, %v839
      %v856 = vsub.f32 %v824, %v840
      %v857 = vsub.f32 %v825, %v841
      %v858 = vsub.f32 %v826, %v842
      %v859 = vsub.f32 %v827, %v843
      %v860 = vsub.f32 %v828, %v844
      %v861 = vsub.f32 %v829, %v845
      %v862 = vsub.f32 %v830, %v846
      %v863 = vsub.f32 %v831, %v847
      %v864 = vmax.f32 %v848, 0.0
      %v865 = vmax.f32 %v849, 0.0
      %v866 = vmax.f32 %v850, 0.0
      %v867 = vmax.f32 %v851, 0.0
      %v868 = vmax.f32 %v852, 0.0
      %v869 = vmax.f32 %v853, 0.0
      %v870 = vmax.f32 %v854, 0.0
      %v871 = vmax.f32 %v855, 0.0
      %v872 = vmax.f32 %v856, 0.0
      %v873 = vmax.f32 %v857, 0.0
      %v874 = vmax.f32 %v858, 0.0
      %v875 = vmax.f32 %v859, 0.0
      %v876 = vmax.f32 %v860, 0.0
      %v877 = vmax.f32 %v861, 0.0
      %v878 = vmax.f32 %v862, 0.0
      %v879 = vmax.f32 %v863, 0.0
      %s880 = ssub.f32 0.0, %s438
      %v881 = vstv %s880
      %v882 = vmul.f32 %v881, %v864
      %v883 = vmul.f32 %v881, %v865
      %v884 = vmul.f32 %v881, %v866
      %v885 = vmul.f32 %v881, %v867
      %v886 = vmul.f32 %v881, %v868
      %v887 = vmul.f32 %v881, %v869
      %v888 = vmul.f32 %v881, %v870
      %v889 = vmul.f32 %v881, %v871
      %v890 = vmul.f32 %v881, %v872
      %v891 = vmul.f32 %v881, %v873
      %v892 = vmul.f32 %v881, %v874
      %v893 = vmul.f32 %v881, %v875
      %v894 = vmul.f32 %v881, %v876
      %v895 = vmul.f32 %v881, %v877
      %v896 = vmul.f32 %v881, %v878
      %v897 = vmul.f32 %v881, %v879
      %v898 = vmul.f32 %v882, 1.442695
      %v899 = vpow.pop %v898
      %v900 = vmul.f32 %v883, 1.442695
      %v901 = vpow.pop %v900
      %v902 = vmul.f32 %v884, 1.442695
      %v903 = vpow.pop %v902
      %v904 = vmul.f32 %v885, 1.442695
      %v905 = vpow.pop %v904
      %v906 = vmul.f32 %v886, 1.442695
      %v907 = vpow.pop %v906
      %v908 = vmul.f32 %v887, 1.442695
      %v909 = vpow.pop %v908
      %v910 = vmul.f32 %v888, 1.442695
      %v911 = vpow.pop %v910
      %v912 = vmul.f32 %v889, 1.442695
      %v913 = vpow.pop %v912
      %v914 = vmul.f32 %v890, 1.442695
      %v915 = vpow.pop %v914
      %v916 = vmul.f32 %v891, 1.442695
      %v917 = vpow.pop %v916
      %v918 = vmul.f32 %v892, 1.442695
      %v919 = vpow.pop %v918
      %v920 = vmul.f32 %v893, 1.442695
      %v921 = vpow.pop %v920
      %v922 = vmul.f32 %v894, 1.442695
      %v923 = vpow.pop %v922
      %v924 = vmul.f32 %v895, 1.442695
      %v925 = vpow.pop %v924
      %v926 = vmul.f32 %v896, 1.442695
      %v927 = vpow.pop %v926
      %v928 = vmul.f32 %v897, 1.442695
      %v929 = vpow.pop %v928
      %v930 = vld [vmem:[%s416] sm:$0xff]
      %v931 = vld [vmem:[%s416 + $0x8] sm:$0xff]
      %v932 = vld [vmem:[%s416 + $0x10] sm:$0xff]
      %v933 = vld [vmem:[%s416 + $0x18] sm:$0xff]
      %v934 = vld [vmem:[%s416 + $0x20] sm:$0xff]
      %v935 = vld [vmem:[%s416 + $0x28] sm:$0xff]
      %v936 = vld [vmem:[%s416 + $0x30] sm:$0xff]
      %v937 = vld [vmem:[%s416 + $0x38] sm:$0xff]
      %v938 = vld [vmem:[%s416 + $0x40] sm:$0xff]
      %v939 = vld [vmem:[%s416 + $0x48] sm:$0xff]
      %v940 = vld [vmem:[%s416 + $0x50] sm:$0xff]
      %v941 = vld [vmem:[%s416 + $0x58] sm:$0xff]
      %v942 = vld [vmem:[%s416 + $0x60] sm:$0xff]
      %v943 = vld [vmem:[%s416 + $0x68] sm:$0xff]
      %v944 = vld [vmem:[%s416 + $0x70] sm:$0xff]
      %v945 = vld [vmem:[%s416 + $0x78] sm:$0xff]
      %v946 = vld [vmem:[%s422] sm:$0xff]
      %v947 = vld [vmem:[%s422 + $0x8] sm:$0xff]
      %v948 = vld [vmem:[%s422 + $0x10] sm:$0xff]
      %v949 = vld [vmem:[%s422 + $0x18] sm:$0xff]
      %v950 = vld [vmem:[%s422 + $0x20] sm:$0xff]
      %v951 = vld [vmem:[%s422 + $0x28] sm:$0xff]
      %v952 = vld [vmem:[%s422 + $0x30] sm:$0xff]
      %v953 = vld [vmem:[%s422 + $0x38] sm:$0xff]
      %v954 = vld [vmem:[%s422 + $0x40] sm:$0xff]
      %v955 = vld [vmem:[%s422 + $0x48] sm:$0xff]
      %v956 = vld [vmem:[%s422 + $0x50] sm:$0xff]
      %v957 = vld [vmem:[%s422 + $0x58] sm:$0xff]
      %v958 = vld [vmem:[%s422 + $0x60] sm:$0xff]
      %v959 = vld [vmem:[%s422 + $0x68] sm:$0xff]
      %v960 = vld [vmem:[%s422 + $0x70] sm:$0xff]
      %v961 = vld [vmem:[%s422 + $0x78] sm:$0xff]
      %962 = vmatprep.subr.mxu0 0.0
      %963 = vmatpush1.msra.mxu0 %v961
      %964 = vmatprep.subr.mxu0 0.0
      %965 = vmatpush1.msra.mxu0 %v960
      %966 = vmatprep.subr.mxu0 0.0
      %967 = vmatpush1.msra.mxu0 %v959
      %968 = vmatprep.subr.mxu0 0.0
      %969 = vmatpush1.msra.mxu0 %v958
      %970 = vmatprep.subr.mxu0 0.0
      %971 = vmatpush1.msra.mxu0 %v957
      %972 = vmatprep.subr.mxu0 0.0
      %973 = vmatpush1.msra.mxu0 %v956
      %974 = vmatprep.subr.mxu0 0.0
      %975 = vmatpush1.msra.mxu0 %v955
      %976 = vmatprep.subr.mxu0 0.0
      %977 = vmatpush1.msra.mxu0 %v954
      %978 = vmatprep.subr.mxu0 0.0
      %979 = vmatpush1.msra.mxu0 %v953
      %980 = vmatprep.subr.mxu0 0.0
      %981 = vmatpush1.msra.mxu0 %v952
      %982 = vmatprep.subr.mxu0 0.0
      %983 = vmatpush1.msra.mxu0 %v951
      %984 = vmatprep.subr.mxu0 0.0
      %985 = vmatpush1.msra.mxu0 %v950
      %986 = vmatprep.subr.mxu0 0.0
      %987 = vmatpush1.msra.mxu0 %v949
      %988 = vmatprep.subr.mxu0 0.0
      %989 = vmatpush1.msra.mxu0 %v948
      %990 = vmatprep.subr.mxu0 0.0
      %991 = vmatpush1.msra.mxu0 %v947
      %992 = vmatprep.subr.mxu0 0.0
      %993 = vmatpush1.msra.mxu0 %v946
      %994 = vmatprep.subr.mxu0 0.0
      %995 = vmatpush2.msra.mxu0 0.0
      %996 = vmatprep.subr.mxu0 0.0
      %997 = vmatpush2.msra.mxu0 0.0
      %998 = vmatprep.subr.mxu0 0.0
      %999 = vmatpush2.msra.mxu0 0.0
      %1000 = vmatprep.subr.mxu0 0.0
      %1001 = vmatpush2.msra.mxu0 0.0
      %1002 = vmatprep.subr.mxu0 0.0
      %1003 = vmatpush2.msra.mxu0 0.0
      %1004 = vmatprep.subr.mxu0 0.0
      %1005 = vmatpush2.msra.mxu0 0.0
      %1006 = vmatprep.subr.mxu0 0.0
      %1007 = vmatpush2.msra.mxu0 0.0
      %1008 = vmatprep.subr.mxu0 0.0
      %1009 = vmatpush2.msra.mxu0 0.0
      %1010 = vmatprep.subr.mxu0 0.0
      %1011 = vmatpush2.msra.mxu0 0.0
      %1012 = vmatprep.subr.mxu0 0.0
      %1013 = vmatpush2.msra.mxu0 0.0
      %1014 = vmatprep.subr.mxu0 0.0
      %1015 = vmatpush2.msra.mxu0 0.0
      %1016 = vmatprep.subr.mxu0 0.0
      %1017 = vmatpush2.msra.mxu0 0.0
      %1018 = vmatprep.subr.mxu0 0.0
      %1019 = vmatpush2.msra.mxu0 0.0
      %1020 = vmatprep.subr.mxu0 0.0
      %1021 = vmatpush2.msra.mxu0 0.0
      %1022 = vmatprep.subr.mxu0 0.0
      %1023 = vmatpush2.msra.mxu0 0.0
      %1024 = vmatprep.subr.mxu0 0.0
      %1025 = vmatpush2.msra.mxu0 0.0
      %1026 = vmatprep.mubr.f32.mxu0 0.0
      %1027 = vmatmul.mubr.f32.gmra.mxu0 %v899
      %v1028 = vpop.f32.mrf.mxu0
      %v1029 = vadd.f32 0.0, %v1028
      %v1030 = vpop.f32.mrf.mxu0
      %1031 = vmatprep.mubr.f32.mxu0 0.0
      %1032 = vmatmul.mubr.f32.gmra.mxu0 %v901
      %v1033 = vpop.f32.mrf.mxu0
      %v1034 = vadd.f32 0.0, %v1033
      %v1035 = vpop.f32.mrf.mxu0
      %1036 = vmatprep.mubr.f32.mxu0 0.0
      %1037 = vmatmul.mubr.f32.gmra.mxu0 %v903
      %v1038 = vpop.f32.mrf.mxu0
      %v1039 = vadd.f32 0.0, %v1038
      %v1040 = vpop.f32.mrf.mxu0
      %1041 = vmatprep.mubr.f32.mxu0 0.0
      %1042 = vmatmul.mubr.f32.gmra.mxu0 %v905
      %v1043 = vpop.f32.mrf.mxu0
      %v1044 = vadd.f32 0.0, %v1043
      %v1045 = vpop.f32.mrf.mxu0
      %1046 = vmatprep.mubr.f32.mxu0 0.0
      %1047 = vmatmul.mubr.f32.gmra.mxu0 %v907
      %v1048 = vpop.f32.mrf.mxu0
      %v1049 = vadd.f32 0.0, %v1048
      %v1050 = vpop.f32.mrf.mxu0
      %1051 = vmatprep.mubr.f32.mxu0 0.0
      %1052 = vmatmul.mubr.f32.gmra.mxu0 %v909
      %v1053 = vpop.f32.mrf.mxu0
      %v1054 = vadd.f32 0.0, %v1053
      %v1055 = vpop.f32.mrf.mxu0
      %1056 = vmatprep.mubr.f32.mxu0 0.0
      %1057 = vmatmul.mubr.f32.gmra.mxu0 %v911
      %v1058 = vpop.f32.mrf.mxu0
      %v1059 = vadd.f32 0.0, %v1058
      %v1060 = vpop.f32.mrf.mxu0
      %1061 = vmatprep.mubr.f32.mxu0 0.0
      %1062 = vmatmul.mubr.f32.gmra.mxu0 %v913
      %v1063 = vpop.f32.mrf.mxu0
      %v1064 = vadd.f32 0.0, %v1063
      %v1065 = vpop.f32.mrf.mxu0
      %1066 = vmatprep.mubr.f32.mxu0 0.0
      %1067 = vmatmul.mubr.f32.gmra.mxu0 %v915
      %v1068 = vpop.f32.mrf.mxu0
      %v1069 = vadd.f32 0.0, %v1068
      %v1070 = vpop.f32.mrf.mxu0
      %1071 = vmatprep.mubr.f32.mxu0 0.0
      %1072 = vmatmul.mubr.f32.gmra.mxu0 %v917
      %v1073 = vpop.f32.mrf.mxu0
      %v1074 = vadd.f32 0.0, %v1073
      %v1075 = vpop.f32.mrf.mxu0
      %1076 = vmatprep.mubr.f32.mxu0 0.0
      %1077 = vmatmul.mubr.f32.gmra.mxu0 %v919
      %v1078 = vpop.f32.mrf.mxu0
      %v1079 = vadd.f32 0.0, %v1078
      %v1080 = vpop.f32.mrf.mxu0
      %1081 = vmatprep.mubr.f32.mxu0 0.0
      %1082 = vmatmul.mubr.f32.gmra.mxu0 %v921
      %v1083 = vpop.f32.mrf.mxu0
      %v1084 = vadd.f32 0.0, %v1083
      %v1085 = vpop.f32.mrf.mxu0
      %1086 = vmatprep.mubr.f32.mxu0 0.0
      %1087 = vmatmul.mubr.f32.gmra.mxu0 %v923
      %v1088 = vpop.f32.mrf.mxu0
      %v1089 = vadd.f32 0.0, %v1088
      %v1090 = vpop.f32.mrf.mxu0
      %1091 = vmatprep.mubr.f32.mxu0 0.0
      %1092 = vmatmul.mubr.f32.gmra.mxu0 %v925
      %v1093 = vpop.f32.mrf.mxu0
      %v1094 = vadd.f32 0.0, %v1093
      %v1095 = vpop.f32.mrf.mxu0
      %1096 = vmatprep.mubr.f32.mxu0 0.0
      %1097 = vmatmul.mubr.f32.gmra.mxu0 %v927
      %v1098 = vpop.f32.mrf.mxu0
      %v1099 = vadd.f32 0.0, %v1098
      %v1100 = vpop.f32.mrf.mxu0
      %1101 = vmatprep.mubr.f32.mxu0 0.0
      %1102 = vmatmul.mubr.f32.gmra.mxu0 %v929
      %v1103 = vpop.f32.mrf.mxu0
      %v1104 = vadd.f32 0.0, %v1103
      %v1105 = vpop.f32.mrf.mxu0
      %1106 = vdwg.mxu0
      %v1107 = vld [vmem:[%s427] sm:$0xff]
      %v1108 = vmul.f32 %v1029, %v930
      %v1109 = vmul.f32 %v1034, %v931
      %v1110 = vmul.f32 %v1039, %v932
      %v1111 = vmul.f32 %v1044, %v933
      %v1112 = vmul.f32 %v1049, %v934
      %v1113 = vmul.f32 %v1054, %v935
      %v1114 = vmul.f32 %v1059, %v936
      %v1115 = vmul.f32 %v1064, %v937
      %v1116 = vmul.f32 %v1069, %v938
      %v1117 = vmul.f32 %v1074, %v939
      %v1118 = vmul.f32 %v1079, %v940
      %v1119 = vmul.f32 %v1084, %v941
      %v1120 = vmul.f32 %v1089, %v942
      %v1121 = vmul.f32 %v1094, %v943
      %v1122 = vmul.f32 %v1099, %v944
      %v1123 = vmul.f32 %v1104, %v945
      %vm1124 = vcmask 7168
      %v1125 = vsel %vm1124, %v1108, 0.0
      %v1126 = vsel %vm1124, %v1109, 0.0
      %v1127 = vadd.f32 %v1125, %v1126
      %v1128 = vsel %vm1124, %v1110, 0.0
      %v1129 = vadd.f32 %v1127, %v1128
      %v1130 = vsel %vm1124, %v1111, 0.0
      %v1131 = vadd.f32 %v1129, %v1130
      %v1132 = vsel %vm1124, %v1112, 0.0
      %v1133 = vadd.f32 %v1131, %v1132
      %v1134 = vsel %vm1124, %v1113, 0.0
      %v1135 = vadd.f32 %v1133, %v1134
      %v1136 = vsel %vm1124, %v1114, 0.0
      %v1137 = vadd.f32 %v1135, %v1136
      %v1138 = vsel %vm1124, %v1115, 0.0
      %v1139 = vadd.f32 %v1137, %v1138
      %v1140 = vsel %vm1124, %v1116, 0.0
      %v1141 = vadd.f32 %v1139, %v1140
      %v1142 = vsel %vm1124, %v1117, 0.0
      %v1143 = vadd.f32 %v1141, %v1142
      %v1144 = vsel %vm1124, %v1118, 0.0
      %v1145 = vadd.f32 %v1143, %v1144
      %v1146 = vsel %vm1124, %v1119, 0.0
      %v1147 = vadd.f32 %v1145, %v1146
      %v1148 = vsel %vm1124, %v1120, 0.0
      %v1149 = vadd.f32 %v1147, %v1148
      %v1150 = vsel %vm1124, %v1121, 0.0
      %v1151 = vadd.f32 %v1149, %v1150
      %v1152 = vsel %vm1124, %v1122, 0.0
      %v1153 = vadd.f32 %v1151, %v1152
      %v1154 = vsel %vm1124, %v1123, 0.0
      %v1155 = vadd.f32 %v1153, %v1154
      %1156 = vadd.xlane.f32.xlu0 %v1155
      %v1157 = vpop.xlane.xlu0 %1156
      %v1158 = vrot.slane %v1157, 4
      %v1159 = vadd.f32 %v1157, %v1158
      %v1160 = vrot.slane %v1159, 2
      %v1161 = vadd.f32 %v1159, %v1160
      %v1162 = vrot.slane %v1161, 1
      %v1163 = vadd.f32 %v1161, %v1162
      %s1164 = vtos %v1163
      %v1165 = vstv %s1164
      %v1166 = vadd.f32 %v1107, %v1165
      %1167 = vst [vmem:[%s427] sm:$0xff] %v1166
      %v1168 = vld [vmem:[%s431] sm:$0xff]
      %v1169 = vmul.f32 %v899, %v899
      %v1170 = vmul.f32 %v901, %v901
      %v1171 = vmul.f32 %v903, %v903
      %v1172 = vmul.f32 %v905, %v905
      %v1173 = vmul.f32 %v907, %v907
      %v1174 = vmul.f32 %v909, %v909
      %v1175 = vmul.f32 %v911, %v911
      %v1176 = vmul.f32 %v913, %v913
      %v1177 = vmul.f32 %v915, %v915
      %v1178 = vmul.f32 %v917, %v917
      %v1179 = vmul.f32 %v919, %v919
      %v1180 = vmul.f32 %v921, %v921
      %v1181 = vmul.f32 %v923, %v923
      %v1182 = vmul.f32 %v925, %v925
      %v1183 = vmul.f32 %v927, %v927
      %v1184 = vmul.f32 %v929, %v929
      %v1185 = vadd.f32 %v1169, %v1170
      %v1186 = vadd.f32 %v1185, %v1171
      %v1187 = vadd.f32 %v1186, %v1172
      %v1188 = vadd.f32 %v1187, %v1173
      %v1189 = vadd.f32 %v1188, %v1174
      %v1190 = vadd.f32 %v1189, %v1175
      %v1191 = vadd.f32 %v1190, %v1176
      %v1192 = vadd.f32 %v1191, %v1177
      %v1193 = vadd.f32 %v1192, %v1178
      %v1194 = vadd.f32 %v1193, %v1179
      %v1195 = vadd.f32 %v1194, %v1180
      %v1196 = vadd.f32 %v1195, %v1181
      %v1197 = vadd.f32 %v1196, %v1182
      %v1198 = vadd.f32 %v1197, %v1183
      %v1199 = vadd.f32 %v1198, %v1184
      %1200 = vadd.xlane.f32.xlu0 %v1199
      %v1201 = vpop.xlane.xlu0 %1200
      %v1202 = vrot.slane %v1201, 4
      %v1203 = vadd.f32 %v1201, %v1202
      %v1204 = vrot.slane %v1203, 2
      %v1205 = vadd.f32 %v1203, %v1204
      %v1206 = vrot.slane %v1205, 1
      %v1207 = vadd.f32 %v1205, %v1206
      %s1208 = vtos %v1207
      %v1209 = vstv %s1208
      %v1210 = vadd.f32 %v1168, %v1209
      %1211 = vst [vmem:[%s431] sm:$0xff] %v1210
      %p1212 = scmp.eq.s32.totalorder %s25, %s26
      // Predicated region
      $region53: #{kta_loss.1} parent=47 // pred_check
        %p1213 = pneg %p1212
      $region54: #{kta_loss.1} parent=47 // pred_check_branch
        %1215 = sbr.rel (%p1213) target = $region56
      $region55: #{kta_loss.1} parent=47 // pred_region
        %v1216 = vlaneseq
        %v1217 = vshrl.u32 %v1216, 7
        %v1218 = vadd.s32 %v1217, 8
        %v1219 = vadd.s32 %v1217, 16
        %v1220 = vadd.s32 %v1217, 24
        %v1221 = vadd.s32 %v1217, 32
        %v1222 = vadd.s32 %v1217, 40
        %v1223 = vadd.s32 %v1217, 48
        %v1224 = vadd.s32 %v1217, 56
        %v1225 = vadd.s32 %v1217, 64
        %v1226 = vadd.s32 %v1217, 72
        %v1227 = vadd.s32 %v1217, 80
        %v1228 = vadd.s32 %v1217, 88
        %v1229 = vadd.s32 %v1217, 96
        %v1230 = vadd.s32 %v1217, 104
        %v1231 = vadd.s32 %v1217, 112
        %v1232 = vadd.s32 %v1217, 120
        %v1233 = vlaneseq
        %v1234 = vand.u32 %v1233, 127
        %vm1235 = vcmp.eq.s32.totalorder %v1217, %v1234
        %vm1236 = vcmp.eq.s32.totalorder %v1218, %v1234
        %vm1237 = vcmp.eq.s32.totalorder %v1219, %v1234
        %vm1238 = vcmp.eq.s32.totalorder %v1220, %v1234
        %vm1239 = vcmp.eq.s32.totalorder %v1221, %v1234
        %vm1240 = vcmp.eq.s32.totalorder %v1222, %v1234
        %vm1241 = vcmp.eq.s32.totalorder %v1223, %v1234
        %vm1242 = vcmp.eq.s32.totalorder %v1224, %v1234
        %vm1243 = vcmp.eq.s32.totalorder %v1225, %v1234
        %vm1244 = vcmp.eq.s32.totalorder %v1226, %v1234
        %vm1245 = vcmp.eq.s32.totalorder %v1227, %v1234
        %vm1246 = vcmp.eq.s32.totalorder %v1228, %v1234
        %vm1247 = vcmp.eq.s32.totalorder %v1229, %v1234
        %vm1248 = vcmp.eq.s32.totalorder %v1230, %v1234
        %vm1249 = vcmp.eq.s32.totalorder %v1231, %v1234
        %vm1250 = vcmp.eq.s32.totalorder %v1232, %v1234
        %v1251 = vsub.f32 1.0, %v899
        %v1252 = vsub.f32 1.0, %v901
        %v1253 = vsub.f32 1.0, %v903
        %v1254 = vsub.f32 1.0, %v905
        %v1255 = vsub.f32 1.0, %v907
        %v1256 = vsub.f32 1.0, %v909
        %v1257 = vsub.f32 1.0, %v911
        %v1258 = vsub.f32 1.0, %v913
        %v1259 = vsub.f32 1.0, %v915
        %v1260 = vsub.f32 1.0, %v917
        %v1261 = vsub.f32 1.0, %v919
        %v1262 = vsub.f32 1.0, %v921
        %v1263 = vsub.f32 1.0, %v923
        %v1264 = vsub.f32 1.0, %v925
        %v1265 = vsub.f32 1.0, %v927
        %v1266 = vsub.f32 1.0, %v929
        %v1267 = vsel %vm1235, %v1251, 0.0
        %v1268 = vsel %vm1236, %v1252, 0.0
        %v1269 = vsel %vm1237, %v1253, 0.0
        %v1270 = vsel %vm1238, %v1254, 0.0
        %v1271 = vsel %vm1239, %v1255, 0.0
        %v1272 = vsel %vm1240, %v1256, 0.0
        %v1273 = vsel %vm1241, %v1257, 0.0
        %v1274 = vsel %vm1242, %v1258, 0.0
        %v1275 = vsel %vm1243, %v1259, 0.0
        %v1276 = vsel %vm1244, %v1260, 0.0
        %v1277 = vsel %vm1245, %v1261, 0.0
        %v1278 = vsel %vm1246, %v1262, 0.0
        %v1279 = vsel %vm1247, %v1263, 0.0
        %v1280 = vsel %vm1248, %v1264, 0.0
        %v1281 = vsel %vm1249, %v1265, 0.0
        %v1282 = vsel %vm1250, %v1266, 0.0
        %1283 = vadd.xlane.f32.xlu0 %v1267
        %v1284 = vpop.xlane.xlu0 %1283
        %1285 = vadd.xlane.f32.xlu0 %v1268
        %v1286 = vpop.xlane.xlu0 %1285
        %1287 = vadd.xlane.f32.xlu0 %v1269
        %v1288 = vpop.xlane.xlu0 %1287
        %1289 = vadd.xlane.f32.xlu0 %v1270
        %v1290 = vpop.xlane.xlu0 %1289
        %1291 = vadd.xlane.f32.xlu0 %v1271
        %v1292 = vpop.xlane.xlu0 %1291
        %1293 = vadd.xlane.f32.xlu0 %v1272
        %v1294 = vpop.xlane.xlu0 %1293
        %1295 = vadd.xlane.f32.xlu0 %v1273
        %v1296 = vpop.xlane.xlu0 %1295
        %1297 = vadd.xlane.f32.xlu0 %v1274
        %v1298 = vpop.xlane.xlu0 %1297
        %1299 = vadd.xlane.f32.xlu0 %v1275
        %v1300 = vpop.xlane.xlu0 %1299
        %1301 = vadd.xlane.f32.xlu0 %v1276
        %v1302 = vpop.xlane.xlu0 %1301
        %1303 = vadd.xlane.f32.xlu0 %v1277
        %v1304 = vpop.xlane.xlu0 %1303
        %1305 = vadd.xlane.f32.xlu0 %v1278
        %v1306 = vpop.xlane.xlu0 %1305
        %1307 = vadd.xlane.f32.xlu0 %v1279
        %v1308 = vpop.xlane.xlu0 %1307
        %1309 = vadd.xlane.f32.xlu0 %v1280
        %v1310 = vpop.xlane.xlu0 %1309
        %1311 = vadd.xlane.f32.xlu0 %v1281
        %v1312 = vpop.xlane.xlu0 %1311
        %1313 = vadd.xlane.f32.xlu0 %v1282
        %v1314 = vpop.xlane.xlu0 %1313
        %v1315 = vld [vmem:[%s427] sm:$0xff]
        %v1316 = vmul.f32 %v1284, %v930
        %v1317 = vmul.f32 %v1286, %v931
        %v1318 = vmul.f32 %v1288, %v932
        %v1319 = vmul.f32 %v1290, %v933
        %v1320 = vmul.f32 %v1292, %v934
        %v1321 = vmul.f32 %v1294, %v935
        %v1322 = vmul.f32 %v1296, %v936
        %v1323 = vmul.f32 %v1298, %v937
        %v1324 = vmul.f32 %v1300, %v938
        %v1325 = vmul.f32 %v1302, %v939
        %v1326 = vmul.f32 %v1304, %v940
        %v1327 = vmul.f32 %v1306, %v941
        %v1328 = vmul.f32 %v1308, %v942
        %v1329 = vmul.f32 %v1310, %v943
        %v1330 = vmul.f32 %v1312, %v944
        %v1331 = vmul.f32 %v1314, %v945
        %v1332 = vmul.f32 %v1316, %v930
        %v1333 = vmul.f32 %v1317, %v931
        %v1334 = vmul.f32 %v1318, %v932
        %v1335 = vmul.f32 %v1319, %v933
        %v1336 = vmul.f32 %v1320, %v934
        %v1337 = vmul.f32 %v1321, %v935
        %v1338 = vmul.f32 %v1322, %v936
        %v1339 = vmul.f32 %v1323, %v937
        %v1340 = vmul.f32 %v1324, %v938
        %v1341 = vmul.f32 %v1325, %v939
        %v1342 = vmul.f32 %v1326, %v940
        %v1343 = vmul.f32 %v1327, %v941
        %v1344 = vmul.f32 %v1328, %v942
        %v1345 = vmul.f32 %v1329, %v943
        %v1346 = vmul.f32 %v1330, %v944
        %v1347 = vmul.f32 %v1331, %v945
        %v1348 = vsel %vm1124, %v1332, 0.0
        %v1349 = vsel %vm1124, %v1333, 0.0
        %v1350 = vadd.f32 %v1348, %v1349
        %v1351 = vsel %vm1124, %v1334, 0.0
        %v1352 = vadd.f32 %v1350, %v1351
        %v1353 = vsel %vm1124, %v1335, 0.0
        %v1354 = vadd.f32 %v1352, %v1353
        %v1355 = vsel %vm1124, %v1336, 0.0
        %v1356 = vadd.f32 %v1354, %v1355
        %v1357 = vsel %vm1124, %v1337, 0.0
        %v1358 = vadd.f32 %v1356, %v1357
        %v1359 = vsel %vm1124, %v1338, 0.0
        %v1360 = vadd.f32 %v1358, %v1359
        %v1361 = vsel %vm1124, %v1339, 0.0
        %v1362 = vadd.f32 %v1360, %v1361
        %v1363 = vsel %vm1124, %v1340, 0.0
        %v1364 = vadd.f32 %v1362, %v1363
        %v1365 = vsel %vm1124, %v1341, 0.0
        %v1366 = vadd.f32 %v1364, %v1365
        %v1367 = vsel %vm1124, %v1342, 0.0
        %v1368 = vadd.f32 %v1366, %v1367
        %v1369 = vsel %vm1124, %v1343, 0.0
        %v1370 = vadd.f32 %v1368, %v1369
        %v1371 = vsel %vm1124, %v1344, 0.0
        %v1372 = vadd.f32 %v1370, %v1371
        %v1373 = vsel %vm1124, %v1345, 0.0
        %v1374 = vadd.f32 %v1372, %v1373
        %v1375 = vsel %vm1124, %v1346, 0.0
        %v1376 = vadd.f32 %v1374, %v1375
        %v1377 = vsel %vm1124, %v1347, 0.0
        %v1378 = vadd.f32 %v1376, %v1377
        %1379 = vadd.xlane.f32.xlu0 %v1378
        %v1380 = vpop.xlane.xlu0 %1379
        %v1381 = vrot.slane %v1380, 4
        %v1382 = vadd.f32 %v1380, %v1381
        %v1383 = vrot.slane %v1382, 2
        %v1384 = vadd.f32 %v1382, %v1383
        %v1385 = vrot.slane %v1384, 1
        %v1386 = vadd.f32 %v1384, %v1385
        %s1387 = vtos %v1386
        %v1388 = vstv %s1387
        %v1389 = vadd.f32 %v1315, %v1388
        %1390 = vst [vmem:[%s427] sm:$0xff] %v1389
        %s1391 = smul.u32 %s25, 128
        %v1392 = vstv %s1391
        %v1393 = vadd.s32 %v1392, %v1217
        %v1394 = vadd.s32 %v1392, %v1218
        %v1395 = vadd.s32 %v1392, %v1219
        %v1396 = vadd.s32 %v1392, %v1220
        %v1397 = vadd.s32 %v1392, %v1221
        %v1398 = vadd.s32 %v1392, %v1222
        %v1399 = vadd.s32 %v1392, %v1223
        %v1400 = vadd.s32 %v1392, %v1224
        %v1401 = vadd.s32 %v1392, %v1225
        %v1402 = vadd.s32 %v1392, %v1226
        %v1403 = vadd.s32 %v1392, %v1227
        %v1404 = vadd.s32 %v1392, %v1228
        %v1405 = vadd.s32 %v1392, %v1229
        %v1406 = vadd.s32 %v1392, %v1230
        %v1407 = vadd.s32 %v1392, %v1231
        %v1408 = vadd.s32 %v1392, %v1232
        %vm1409 = vcmp.lt.s32.totalorder %v1393, 200
        %vm1410 = vcmp.lt.s32.totalorder %v1394, 200
        %vm1411 = vcmp.lt.s32.totalorder %v1395, 200
        %vm1412 = vcmp.lt.s32.totalorder %v1396, 200
        %vm1413 = vcmp.lt.s32.totalorder %v1397, 200
        %vm1414 = vcmp.lt.s32.totalorder %v1398, 200
        %vm1415 = vcmp.lt.s32.totalorder %v1399, 200
        %vm1416 = vcmp.lt.s32.totalorder %v1400, 200
        %vm1417 = vcmp.lt.s32.totalorder %v1401, 200
        %vm1418 = vcmp.lt.s32.totalorder %v1402, 200
        %vm1419 = vcmp.lt.s32.totalorder %v1403, 200
        %vm1420 = vcmp.lt.s32.totalorder %v1404, 200
        %vm1421 = vcmp.lt.s32.totalorder %v1405, 200
        %vm1422 = vcmp.lt.s32.totalorder %v1406, 200
        %vm1423 = vcmp.lt.s32.totalorder %v1407, 200
        %vm1424 = vcmp.lt.s32.totalorder %v1408, 200
        %vm1425 = vmand %vm1235, %vm1409
        %vm1426 = vmand %vm1236, %vm1410
        %vm1427 = vmand %vm1237, %vm1411
        %vm1428 = vmand %vm1238, %vm1412
        %vm1429 = vmand %vm1239, %vm1413
        %vm1430 = vmand %vm1240, %vm1414
        %vm1431 = vmand %vm1241, %vm1415
        %vm1432 = vmand %vm1242, %vm1416
        %vm1433 = vmand %vm1243, %vm1417
        %vm1434 = vmand %vm1244, %vm1418
        %vm1435 = vmand %vm1245, %vm1419
        %vm1436 = vmand %vm1246, %vm1420
        %vm1437 = vmand %vm1247, %vm1421
        %vm1438 = vmand %vm1248, %vm1422
        %vm1439 = vmand %vm1249, %vm1423
        %vm1440 = vmand %vm1250, %vm1424
        %v1441 = vld [vmem:[%s431] sm:$0xff]
        %v1442 = vsub.f32 1.0, %v1169
        %v1443 = vsub.f32 1.0, %v1170
        %v1444 = vsub.f32 1.0, %v1171
        %v1445 = vsub.f32 1.0, %v1172
        %v1446 = vsub.f32 1.0, %v1173
        %v1447 = vsub.f32 1.0, %v1174
        %v1448 = vsub.f32 1.0, %v1175
        %v1449 = vsub.f32 1.0, %v1176
        %v1450 = vsub.f32 1.0, %v1177
        %v1451 = vsub.f32 1.0, %v1178
        %v1452 = vsub.f32 1.0, %v1179
        %v1453 = vsub.f32 1.0, %v1180
        %v1454 = vsub.f32 1.0, %v1181
        %v1455 = vsub.f32 1.0, %v1182
        %v1456 = vsub.f32 1.0, %v1183
        %v1457 = vsub.f32 1.0, %v1184
        %v1458 = vsel %vm1425, %v1442, 0.0
        %v1459 = vsel %vm1426, %v1443, 0.0
        %v1460 = vsel %vm1427, %v1444, 0.0
        %v1461 = vsel %vm1428, %v1445, 0.0
        %v1462 = vsel %vm1429, %v1446, 0.0
        %v1463 = vsel %vm1430, %v1447, 0.0
        %v1464 = vsel %vm1431, %v1448, 0.0
        %v1465 = vsel %vm1432, %v1449, 0.0
        %v1466 = vsel %vm1433, %v1450, 0.0
        %v1467 = vsel %vm1434, %v1451, 0.0
        %v1468 = vsel %vm1435, %v1452, 0.0
        %v1469 = vsel %vm1436, %v1453, 0.0
        %v1470 = vsel %vm1437, %v1454, 0.0
        %v1471 = vsel %vm1438, %v1455, 0.0
        %v1472 = vsel %vm1439, %v1456, 0.0
        %v1473 = vsel %vm1440, %v1457, 0.0
        %v1474 = vadd.f32 %v1458, %v1459
        %v1475 = vadd.f32 %v1474, %v1460
        %v1476 = vadd.f32 %v1475, %v1461
        %v1477 = vadd.f32 %v1476, %v1462
        %v1478 = vadd.f32 %v1477, %v1463
        %v1479 = vadd.f32 %v1478, %v1464
        %v1480 = vadd.f32 %v1479, %v1465
        %v1481 = vadd.f32 %v1480, %v1466
        %v1482 = vadd.f32 %v1481, %v1467
        %v1483 = vadd.f32 %v1482, %v1468
        %v1484 = vadd.f32 %v1483, %v1469
        %v1485 = vadd.f32 %v1484, %v1470
        %v1486 = vadd.f32 %v1485, %v1471
        %v1487 = vadd.f32 %v1486, %v1472
        %v1488 = vadd.f32 %v1487, %v1473
        %1489 = vadd.xlane.f32.xlu0 %v1488
        %v1490 = vpop.xlane.xlu0 %1489
        %v1491 = vrot.slane %v1490, 4
        %v1492 = vadd.f32 %v1490, %v1491
        %v1493 = vrot.slane %v1492, 2
        %v1494 = vadd.f32 %v1492, %v1493
        %v1495 = vrot.slane %v1494, 1
        %v1496 = vadd.f32 %v1494, %v1495
        %s1497 = vtos %v1496
        %v1498 = vstv %s1497
        %v1499 = vadd.f32 %v1441, %v1498
        %1500 = vst [vmem:[%s431] sm:$0xff] %v1499
      $region56: #{kta_loss.1} parent=47 // pred_fallthru
        _
      %p1501 = scmp.eq.s32.totalorder %s25, 1
      %p1502 = scmp.eq.s32.totalorder %s26, 1
      %p1503 = por %p1501, %p1502
      // Predicated region
      $region57: #{kta_loss.1} parent=47 // pred_check
        %p1504 = pneg %p1503
      $region58: #{kta_loss.1} parent=47 // pred_check_branch
        %1506 = sbr.rel (%p1504) target = $region60
      $region59: #{kta_loss.1} parent=47 // pred_region
        %s1507 = smul.u32 %s25, 128
        %v1508 = vlaneseq
        %v1509 = vshrl.u32 %v1508, 7
        %v1510 = vadd.s32 %v1509, 8
        %v1511 = vadd.s32 %v1509, 16
        %v1512 = vadd.s32 %v1509, 24
        %v1513 = vadd.s32 %v1509, 32
        %v1514 = vadd.s32 %v1509, 40
        %v1515 = vadd.s32 %v1509, 48
        %v1516 = vadd.s32 %v1509, 56
        %v1517 = vadd.s32 %v1509, 64
        %v1518 = vadd.s32 %v1509, 72
        %v1519 = vadd.s32 %v1509, 80
        %v1520 = vadd.s32 %v1509, 88
        %v1521 = vadd.s32 %v1509, 96
        %v1522 = vadd.s32 %v1509, 104
        %v1523 = vadd.s32 %v1509, 112
        %v1524 = vadd.s32 %v1509, 120
        %v1525 = vstv %s1507
        %v1526 = vadd.s32 %v1525, %v1509
        %v1527 = vadd.s32 %v1525, %v1510
        %v1528 = vadd.s32 %v1525, %v1511
        %v1529 = vadd.s32 %v1525, %v1512
        %v1530 = vadd.s32 %v1525, %v1513
        %v1531 = vadd.s32 %v1525, %v1514
        %v1532 = vadd.s32 %v1525, %v1515
        %v1533 = vadd.s32 %v1525, %v1516
        %v1534 = vadd.s32 %v1525, %v1517
        %v1535 = vadd.s32 %v1525, %v1518
        %v1536 = vadd.s32 %v1525, %v1519
        %v1537 = vadd.s32 %v1525, %v1520
        %v1538 = vadd.s32 %v1525, %v1521
        %v1539 = vadd.s32 %v1525, %v1522
        %v1540 = vadd.s32 %v1525, %v1523
        %v1541 = vadd.s32 %v1525, %v1524
        %s1542 = smul.u32 %s26, 128
        %v1543 = vlaneseq
        %v1544 = vand.u32 %v1543, 127
        %v1545 = vstv %s1542
        %v1546 = vadd.s32 %v1545, %v1544
        %vm1547 = vcmp.ge.s32.totalorder %v1526, 200
        %vm1548 = vcmp.ge.s32.totalorder %v1527, 200
        %vm1549 = vcmp.ge.s32.totalorder %v1528, 200
        %vm1550 = vcmp.ge.s32.totalorder %v1529, 200
        %vm1551 = vcmp.ge.s32.totalorder %v1530, 200
        %vm1552 = vcmp.ge.s32.totalorder %v1531, 200
        %vm1553 = vcmp.ge.s32.totalorder %v1532, 200
        %vm1554 = vcmp.ge.s32.totalorder %v1533, 200
        %vm1555 = vcmp.ge.s32.totalorder %v1534, 200
        %vm1556 = vcmp.ge.s32.totalorder %v1535, 200
        %vm1557 = vcmp.ge.s32.totalorder %v1536, 200
        %vm1558 = vcmp.ge.s32.totalorder %v1537, 200
        %vm1559 = vcmp.ge.s32.totalorder %v1538, 200
        %vm1560 = vcmp.ge.s32.totalorder %v1539, 200
        %vm1561 = vcmp.ge.s32.totalorder %v1540, 200
        %vm1562 = vcmp.ge.s32.totalorder %v1541, 200
        %vm1563 = vcmp.ge.s32.totalorder %v1546, 200
        %vm1564 = vmor %vm1547, %vm1563
        %vm1565 = vmor %vm1548, %vm1563
        %vm1566 = vmor %vm1549, %vm1563
        %vm1567 = vmor %vm1550, %vm1563
        %vm1568 = vmor %vm1551, %vm1563
        %vm1569 = vmor %vm1552, %vm1563
        %vm1570 = vmor %vm1553, %vm1563
        %vm1571 = vmor %vm1554, %vm1563
        %vm1572 = vmor %vm1555, %vm1563
        %vm1573 = vmor %vm1556, %vm1563
        %vm1574 = vmor %vm1557, %vm1563
        %vm1575 = vmor %vm1558, %vm1563
        %vm1576 = vmor %vm1559, %vm1563
        %vm1577 = vmor %vm1560, %vm1563
        %vm1578 = vmor %vm1561, %vm1563
        %vm1579 = vmor %vm1562, %vm1563
        %v1580 = vld [vmem:[%s431] sm:$0xff]
        %v1581 = vsel %vm1564, %v1169, 0.0
        %v1582 = vsel %vm1565, %v1170, 0.0
        %v1583 = vsel %vm1566, %v1171, 0.0
        %v1584 = vsel %vm1567, %v1172, 0.0
        %v1585 = vsel %vm1568, %v1173, 0.0
        %v1586 = vsel %vm1569, %v1174, 0.0
        %v1587 = vsel %vm1570, %v1175, 0.0
        %v1588 = vsel %vm1571, %v1176, 0.0
        %v1589 = vsel %vm1572, %v1177, 0.0
        %v1590 = vsel %vm1573, %v1178, 0.0
        %v1591 = vsel %vm1574, %v1179, 0.0
        %v1592 = vsel %vm1575, %v1180, 0.0
        %v1593 = vsel %vm1576, %v1181, 0.0
        %v1594 = vsel %vm1577, %v1182, 0.0
        %v1595 = vsel %vm1578, %v1183, 0.0
        %v1596 = vsel %vm1579, %v1184, 0.0
        %v1597 = vadd.f32 %v1581, %v1582
        %v1598 = vadd.f32 %v1597, %v1583
        %v1599 = vadd.f32 %v1598, %v1584
        %v1600 = vadd.f32 %v1599, %v1585
        %v1601 = vadd.f32 %v1600, %v1586
        %v1602 = vadd.f32 %v1601, %v1587
        %v1603 = vadd.f32 %v1602, %v1588
        %v1604 = vadd.f32 %v1603, %v1589
        %v1605 = vadd.f32 %v1604, %v1590
        %v1606 = vadd.f32 %v1605, %v1591
        %v1607 = vadd.f32 %v1606, %v1592
        %v1608 = vadd.f32 %v1607, %v1593
        %v1609 = vadd.f32 %v1608, %v1594
        %v1610 = vadd.f32 %v1609, %v1595
        %v1611 = vadd.f32 %v1610, %v1596
        %1612 = vadd.xlane.f32.xlu0 %v1611
        %v1613 = vpop.xlane.xlu0 %1612
        %v1614 = vrot.slane %v1613, 4
        %v1615 = vadd.f32 %v1613, %v1614
        %v1616 = vrot.slane %v1615, 2
        %v1617 = vadd.f32 %v1615, %v1616
        %v1618 = vrot.slane %v1617, 1
        %v1619 = vadd.f32 %v1617, %v1618
        %s1620 = vtos %v1619
        %v1621 = vstv %s1620
        %v1622 = vsub.f32 %v1580, %v1621
        %1623 = vst [vmem:[%s431] sm:$0xff] %v1622
      $region60: #{kta_loss.1} parent=47 // pred_fallthru
        _
      %p1624 = scmp.lt.s32.totalorder %s25, 1
      %s1625 = scalar_select %p1624, %s25, 1
      %s1626 = smul.addr %s1625, 8
      %s1627 = scalar_lea.vmem %s7, %s1626
      %p1628 = scmp.lt.s32.totalorder %s25, 1
      %s1629 = scalar_select %p1628, %s25, 1
      %s1630 = smul.addr %s1629, 8
      %s1631 = scalar_lea.vmem %s8, %s1630
      // Predicated region
      $region61: #{kta_loss.1} parent=47 // pred_check
        %p1632 = pneg %p228
      $region62: #{kta_loss.1} parent=47 // pred_check_branch
        %1634 = sbr.rel (%p1632) target = $region64
      $region63: #{kta_loss.1} parent=47 // pred_region
        _
      $region64: #{kta_loss.1} parent=47 // pred_fallthru
        _
      // Predicated region
      $region65: #{kta_loss.1} parent=47 // pred_check
        %p1635 = pneg %p254
      $region66: #{kta_loss.1} parent=47 // pred_check_branch
        %1637 = sbr.rel (%p1635) target = $region68
      $region67: #{kta_loss.1} parent=47 // pred_region
        _
      $region68: #{kta_loss.1} parent=47 // pred_fallthru
        _
    $region48: #{kta_loss.1} parent=5 // pred_fallthru
      _
    %p1638 = scmp.le.s32.totalorder 2, %s16
    // Predicated region
    $region69: #{kta_loss.1} parent=5 // pred_check
      %p1639 = pneg %p1638
    $region70: #{kta_loss.1} parent=5 // pred_check_branch
      %1641 = sbr.rel (%p1639) target = $region72
    $region71: #{kta_loss.1} parent=5 // pred_region
      %s1642 = ssub.s32 %s16, 2
      // Predicated region
      $region73: #{kta_loss.1} parent=71 // pred_check
        %p1643 = pneg %p234
      $region74: #{kta_loss.1} parent=71 // pred_check_branch
        %1645 = sbr.rel (%p1643) target = $region76
      $region75: #{kta_loss.1} parent=71 // pred_region
        %p1646 = scmp.lt.s32.totalorder %s27, 1
        %s1647 = scalar_select %p1646, %s27, 1
        %s1648 = smul.addr %s1647, 8
        %s1649 = scalar_lea.vmem %s7, %s1648
      $region76: #{kta_loss.1} parent=71 // pred_fallthru
        _
      // Predicated region
      $region77: #{kta_loss.1} parent=71 // pred_check
        %p1650 = pneg %p260
      $region78: #{kta_loss.1} parent=71 // pred_check_branch
        %1652 = sbr.rel (%p1650) target = $region80
      $region79: #{kta_loss.1} parent=71 // pred_region
        %p1653 = scmp.lt.s32.totalorder %s27, 1
        %s1654 = scalar_select %p1653, %s27, 1
        %s1655 = smul.addr %s1654, 8
        %s1656 = scalar_lea.vmem %s8, %s1655
      $region80: #{kta_loss.1} parent=71 // pred_fallthru
        _
    $region72: #{kta_loss.1} parent=5 // pred_fallthru
      _
  $region6: #{kta_loss.1} parent=0 // loop_footer
    %s20 = sadd.s32 1, %s16
  $region7: #{kta_loss.1} parent=0 // loop_footer_branch
    %15 = sbr.rel target = $region3
  $region8: #{kta_loss.1} parent=0 // loop_exit
    _

</llo_original>
